<compile_context>
chip_gen: v5e
topology: v5e:2x2
jax: 0.10.0
libtpu: 0.0.40
codegen_flags: <defaults>
</compile_context>

<pallas_src>
import functools

import jax
import jax.numpy as jnp
from jax.experimental import pallas as pl
from jax.experimental.pallas import tpu as pltpu

_LANE = 128


def _round_up(n, m):
    return (n + m - 1) // m * m


def _pad_axis(a, axis, new_size):
    if a.shape[axis] == new_size:
        return a
    pad = [(0, 0)] * a.ndim
    pad[axis] = (0, new_size - a.shape[axis])
    return jnp.pad(a, pad)


def _pad_gate_axis(a, hidden, hidden_pad, axis=-1):
    """Pad the packed [i|f|g|o] gate axis from 4*hidden to 4*hidden_pad (per gate)."""
    if hidden_pad == hidden:
        return a
    axis = axis % a.ndim
    shp = a.shape
    a4 = a.reshape(shp[:axis] + (4, hidden) + shp[axis + 1:])
    pad = [(0, 0)] * a4.ndim
    pad[axis + 1] = (0, hidden_pad - hidden)
    a4 = jnp.pad(a4, pad)
    return a4.reshape(shp[:axis] + (4 * hidden_pad,) + shp[axis + 1:])


def _decoder_kernel(x_ref, h0_ref, c0_ref, wih_ref, whh_ref, bias_ref,
                    wo_ref, bo_ref, out_ref, hid_ref, h_scr, c_scr,
                    *, hidden_pad, t_chunk):
    Hp = hidden_pad
    t_blk = pl.program_id(1)

    # First T-block of this batch block: load the initial state into the carries.
    @pl.when(t_blk == 0)
    def _():
        h_scr[...] = h0_ref[...]
        c_scr[...] = c0_ref[...]

    b_blk = h_scr.shape[0]
    wih = wih_ref[...]                                          # (I, 4Hp), resident
    whh = whh_ref[...]                                          # (Hp, 4Hp), resident
    gbias = jnp.broadcast_to(bias_ref[...], (b_blk, 4 * Hp))    # hoisted out of the loop

    def step(t, carry):
        h, c = carry
        # Fused input projection for this timestep; independent of the carry,
        # so it pipelines ahead of the recurrent matmul under the unroll.
        gx = jnp.dot(x_ref[t], wih, preferred_element_type=jnp.float32) + gbias
        gates = jnp.dot(h, whh, preferred_element_type=jnp.float32) + gx
        # PyTorch gate order i, f, g, o; Hp is lane-aligned so each slice is a
        # vreg-aligned block (no lane realignment on the serial path).
        i_g = jax.nn.sigmoid(gates[:, 0 * Hp:1 * Hp])
        f_g = jax.nn.sigmoid(gates[:, 1 * Hp:2 * Hp])
        g_g = jnp.tanh(gates[:, 2 * Hp:3 * Hp])
        o_g = jax.nn.sigmoid(gates[:, 3 * Hp:4 * Hp])
        c_new = f_g * c + i_g * g_g
        h_new = o_g * jnp.tanh(c_new)
        return h_new, c_new

    # Bounded unroll: full for short chunks, partial for long ones (keeps LLO
    # scheduling visibility without exploding vreg live ranges / spills).
    unroll = True if t_chunk <= 16 else 8
    h_f, c_f = jax.lax.fori_loop(0, t_chunk, step, (h_scr[...], c_scr[...]),
                                 unroll=unroll)
    h_scr[...] = h_f
    c_scr[...] = c_f

    # Last T-block: emit final hidden state + fused Linear head (lane-dense, padded).
    @pl.when(t_blk == pl.num_programs(1) - 1)
    def _():
        hid_ref[...] = h_f
        out_ref[...] = (jnp.dot(h_f, wo_ref[...], preferred_element_type=jnp.float32)
                        + bo_ref[...])


def decoder_forward(inputs, h0, c0, params, *, t_chunk_max=32):
    """inputs: (B, T, I) f32; h0/c0: (1, B, H); returns (out (B, O), hidden (1, B, H))."""
    B, T, I = inputs.shape
    H = params["w_hh_t"].shape[0]          # w_hh_t: (H, 4H)
    O = params["w_out"].shape[1]           # w_out:  (H, O)

    Hp = _round_up(H, _LANE)
    Op = _round_up(O, _LANE)

    # ---- one-time parameter prep (fold into param init at production) ----
    # Zero padding keeps the math exact: padded gate pre-activations are 0,
    # and with zero-padded initial state the padded h/c lanes stay 0 forever.
    wih_p = _pad_gate_axis(params["w_ih_t"], H, Hp)                       # (I, 4Hp)
    whh_p = _pad_gate_axis(_pad_axis(params["w_hh_t"], 0, Hp), H, Hp)     # (Hp, 4Hp)
    bias_p = _pad_gate_axis((params["b_ih"] + params["b_hh"]).reshape(1, 4 * H), H, Hp)
    wo_p = _pad_axis(_pad_axis(params["w_out"], 0, Hp), 1, Op)            # (Hp, Op)
    bo_p = _pad_axis(params["b_out"].reshape(1, O), 1, Op)                # (1, Op)

    h0p = _pad_axis(h0[0], 1, Hp)          # (B, Hp)
    c0p = _pad_axis(c0[0], 1, Hp)

    # Time-major x: this transpose moves I-wide rows (I << 4H), NOT the 4H-wide
    # gate tensor — the gate projection is fused into the kernel instead.
    x_tm = jnp.transpose(inputs, (1, 0, 2))   # (T, B, I)

    # T-chunking: largest divisor of T <= t_chunk_max (streamed, double-buffered).
    t_chunk = max(d for d in range(1, min(T, t_chunk_max) + 1) if T % d == 0)
    nt = T // t_chunk

    # Batch split across TensorCores (useful on v7x when B is big & 8-aligned).
    b_blk = B // 2 if (B >= 16 and (B // 2) % 8 == 0) else B
    nb = B // b_blk

    # VMEM budget: 2 x-chunk buffers + (double-buffered) weights + state/outputs
    # + h/c scratch. Floor 32 MiB (v5e/v6e scoped defaults), cap 48 MiB (v7x 64 MiB).
    f32b = 4
    est = (2 * t_chunk * b_blk * I
           + 2 * (I * 4 * Hp + Hp * 4 * Hp + 4 * Hp + Hp * Op + Op)
           + 2 * 2 * b_blk * Hp
           + 2 * b_blk * (Op + Hp)
           + 2 * b_blk * Hp) * f32b
    vmem_limit = int(min(48 * 1024 * 1024, max(32 * 1024 * 1024, 2 * est)))

    kernel = functools.partial(_decoder_kernel, hidden_pad=Hp, t_chunk=t_chunk)

    grid_spec = pltpu.PrefetchScalarGridSpec(
        num_scalar_prefetch=0,
        grid=(nb, nt),
        in_specs=[
            pl.BlockSpec((t_chunk, b_blk, I), lambda b, t: (t, b, 0)),   # x chunk (streamed)
            pl.BlockSpec((b_blk, Hp), lambda b, t: (b, 0)),              # h0
            pl.BlockSpec((b_blk, Hp), lambda b, t: (b, 0)),              # c0
            pl.BlockSpec((I, 4 * Hp), lambda b, t: (0, 0)),              # W_ih^T (resident)
            pl.BlockSpec((Hp, 4 * Hp), lambda b, t: (0, 0)),             # W_hh^T (resident)
            pl.BlockSpec((1, 4 * Hp), lambda b, t: (0, 0)),              # b_ih + b_hh
            pl.BlockSpec((Hp, Op), lambda b, t: (0, 0)),                 # W_out^T
            pl.BlockSpec((1, Op), lambda b, t: (0, 0)),                  # b_out
        ],
        out_specs=(
            pl.BlockSpec((b_blk, Op), lambda b, t: (b, 0)),              # out (written at last t)
            pl.BlockSpec((b_blk, Hp), lambda b, t: (b, 0)),              # hidden (written at last t)
        ),
        scratch_shapes=[
            pltpu.VMEM((b_blk, Hp), jnp.float32),                        # h carry
            pltpu.VMEM((b_blk, Hp), jnp.float32),                        # c carry
        ],
    )

    out_p, hid_p = pl.pallas_call(
        kernel,
        out_shape=(jax.ShapeDtypeStruct((B, Op), jnp.float32),
                   jax.ShapeDtypeStruct((B, Hp), jnp.float32)),
        grid_spec=grid_spec,
        compiler_params=pltpu.CompilerParams(
            dimension_semantics=("parallel", "arbitrary"),
            vmem_limit_bytes=vmem_limit),
    )(x_tm, h0p, c0p, wih_p, whh_p, bias_p, wo_p, bo_p)

    # Strip lane padding; hidden -> (1, B, H) to match nn.LSTM.
    return out_p[:, :O], hid_p[:, :H][None]


def init_params(key, input_dim, hidden_dim, output_dim):
    """Deterministic synthetic params, PyTorch-style uniform(-1/sqrt(H), 1/sqrt(H))."""
    ks = jax.random.split(key, 6)
    s = 1.0 / jnp.sqrt(jnp.float32(hidden_dim))
    w_ih = jax.random.uniform(ks[0], (4 * hidden_dim, input_dim), jnp.float32, -s, s)
    w_hh = jax.random.uniform(ks[1], (4 * hidden_dim, hidden_dim), jnp.float32, -s, s)
    b_ih = jax.random.uniform(ks[2], (4 * hidden_dim,), jnp.float32, -s, s)
    b_hh = jax.random.uniform(ks[3], (4 * hidden_dim,), jnp.float32, -s, s)
    w_o = jax.random.uniform(ks[4], (output_dim, hidden_dim), jnp.float32, -s, s)
    b_o = jax.random.uniform(ks[5], (output_dim,), jnp.float32, -s, s)
    return {
        "w_ih_t": w_ih.T,            # (I, 4H)
        "w_hh_t": w_hh.T,            # (H, 4H)
        "b_ih": b_ih,
        "b_hh": b_hh,
        "w_out": w_o.T,              # (H, O)
        "b_out": b_o,
    }


def reference_forward(inputs, h0, c0, params):
    """Pure-JAX LSTM reference matching torch.nn.LSTM semantics."""
    H = params["w_hh_t"].shape[0]
    bias = params["b_ih"] + params["b_hh"]

    def step(carry, x_t):
        h, c = carry
        gates = x_t @ params["w_ih_t"] + h @ params["w_hh_t"] + bias
        i = jax.nn.sigmoid(gates[:, 0 * H:1 * H])
        f = jax.nn.sigmoid(gates[:, 1 * H:2 * H])
        g = jnp.tanh(gates[:, 2 * H:3 * H])
        o = jax.nn.sigmoid(gates[:, 3 * H:4 * H])
        c_new = f * c + i * g
        h_new = o * jnp.tanh(c_new)
        return (h_new, c_new), h_new

    (h_f, _), _ = jax.lax.scan(step, (h0[0], c0[0]),
                               jnp.transpose(inputs, (1, 0, 2)))
    out = h_f @ params["w_out"] + params["b_out"]
    return out, h_f[None]


if __name__ == "__main__":
    B, T, I, H, O = 2, 8, 4, 32, 16
    key = jax.random.PRNGKey(0)
    k_x, k_h, k_c, k_p = jax.random.split(key, 4)

    x = jax.random.normal(k_x, (B, T, I), jnp.float32)
    h0 = jax.random.normal(k_h, (1, B, H), jnp.float32)
    c0 = jax.random.normal(k_c, (1, B, H), jnp.float32)
    params = init_params(k_p, I, H, O)

    # t_chunk_max=4 -> two streamed T-chunks, exercising the grid + scratch-carry path.
    out, hidden = decoder_forward(x, h0, c0, params, t_chunk_max=4)
    jax.block_until_ready((out, hidden))

    out_ref, hid_ref = reference_forward(x, h0, c0, params)
    assert out.shape == (B, O) and hidden.shape == (1, B, H)
    assert jnp.allclose(out, out_ref, atol=1e-5), "output mismatch vs reference"
    assert jnp.allclose(hidden, hid_ref, atol=1e-5), "hidden mismatch vs reference"

    print("KERNEL_OK")
</pallas_src>

<mosaic_0001>
module attributes {stable_mosaic.version = 11 : i64} {
  func.func @_decoder_kernel(%arg0: i32, %arg1: i32, %arg2: memref<4x2x4xf32, #tpu.memory_space<vmem>>, %arg3: memref<2x128xf32, #tpu.memory_space<vmem>>, %arg4: memref<2x128xf32, #tpu.memory_space<vmem>>, %arg5: memref<4x512xf32, #tpu.memory_space<vmem>>, %arg6: memref<128x512xf32, #tpu.memory_space<vmem>>, %arg7: memref<1x512xf32, #tpu.memory_space<vmem>>, %arg8: memref<128x128xf32, #tpu.memory_space<vmem>>, %arg9: memref<1x128xf32, #tpu.memory_space<vmem>>, %arg10: memref<2x128xf32, #tpu.memory_space<vmem>>, %arg11: memref<2x128xf32, #tpu.memory_space<vmem>>, %arg12: memref<2x128xf32, #tpu.memory_space<vmem>>, %arg13: memref<2x128xf32, #tpu.memory_space<vmem>>) attributes {dimension_semantics = [#tpu.dimension_semantics<parallel>, #tpu.dimension_semantics<arbitrary>], iteration_bounds = array<i64: 1, 2>, scalar_prefetch = 0 : i64, scratch_operands = 2 : i64, tpu.core_type = #tpu.core_type<tc>, window_params = [{transform_indices = @transform_0, window_bounds = array<i64: 4, 2, 4>}, {transform_indices = @transform_1, window_bounds = array<i64: 2, 128>}, {transform_indices = @transform_2, window_bounds = array<i64: 2, 128>}, {pipeline_mode = #tpu.pipeline_mode<synchronous>, transform_indices = @transform_3, window_bounds = array<i64: 4, 512>}, {pipeline_mode = #tpu.pipeline_mode<synchronous>, transform_indices = @transform_4, window_bounds = array<i64: 128, 512>}, {pipeline_mode = #tpu.pipeline_mode<synchronous>, transform_indices = @transform_5, window_bounds = array<i64: 1, 512>}, {pipeline_mode = #tpu.pipeline_mode<synchronous>, transform_indices = @transform_6, window_bounds = array<i64: 128, 128>}, {pipeline_mode = #tpu.pipeline_mode<synchronous>, transform_indices = @transform_7, window_bounds = array<i64: 1, 128>}, {transform_indices = @transform_8, window_bounds = array<i64: 2, 128>}, {transform_indices = @transform_9, window_bounds = array<i64: 2, 128>}]} {
    %c0_i32 = arith.constant 0 : i32
    %0 = arith.cmpi eq, %arg1, %c0_i32 : i32
    %1 = arith.extui %0 : i1 to i32
    %c0_i32_0 = arith.constant 0 : i32
    %2 = arith.cmpi ne, %1, %c0_i32_0 : i32
    scf.if %2 {
      %c0_44 = arith.constant 0 : index
      %c0_45 = arith.constant 0 : index
      %143 = vector.load %arg3[%c0_44, %c0_45] : memref<2x128xf32, #tpu.memory_space<vmem>>, vector<2x128xf32>
      %c0_46 = arith.constant 0 : index
      %c0_47 = arith.constant 0 : index
      %144 = vector.load %arg12[%c0_46, %c0_47] : memref<2x128xf32, #tpu.memory_space<vmem>>, vector<2x128xf32>
      tpu.vector_store %arg12[%c0_46, %c0_47], %143 {strides = array<i32>} : memref<2x128xf32, #tpu.memory_space<vmem>>, vector<2x128xf32>,
      %c0_48 = arith.constant 0 : index
      %c0_49 = arith.constant 0 : index
      %145 = vector.load %arg4[%c0_48, %c0_49] : memref<2x128xf32, #tpu.memory_space<vmem>>, vector<2x128xf32>
      %c0_50 = arith.constant 0 : index
      %c0_51 = arith.constant 0 : index
      %146 = vector.load %arg13[%c0_50, %c0_51] : memref<2x128xf32, #tpu.memory_space<vmem>>, vector<2x128xf32>
      tpu.vector_store %arg13[%c0_50, %c0_51], %145 {strides = array<i32>} : memref<2x128xf32, #tpu.memory_space<vmem>>, vector<2x128xf32>,
    } else {
    }
    %c0 = arith.constant 0 : index
    %c0_1 = arith.constant 0 : index
    %3 = vector.load %arg5[%c0, %c0_1] : memref<4x512xf32, #tpu.memory_space<vmem>>, vector<4x512xf32>
    %c0_2 = arith.constant 0 : index
    %c0_3 = arith.constant 0 : index
    %4 = vector.load %arg6[%c0_2, %c0_3] : memref<128x512xf32, #tpu.memory_space<vmem>>, vector<128x512xf32>
    %c0_4 = arith.constant 0 : index
    %c0_5 = arith.constant 0 : index
    %5 = vector.load %arg7[%c0_4, %c0_5] : memref<1x512xf32, #tpu.memory_space<vmem>>, vector<1x512xf32>
    %6 = vector.shape_cast %5 : vector<1x512xf32> to vector<1x512xf32>
    %7 = vector.broadcast %6 : vector<1x512xf32> to vector<2x512xf32>
    %c0_6 = arith.constant 0 : index
    %c0_7 = arith.constant 0 : index
    %8 = vector.load %arg12[%c0_6, %c0_7] : memref<2x128xf32, #tpu.memory_space<vmem>>, vector<2x128xf32>
    %c0_8 = arith.constant 0 : index
    %c0_9 = arith.constant 0 : index
    %9 = vector.load %arg13[%c0_8, %c0_9] : memref<2x128xf32, #tpu.memory_space<vmem>>, vector<2x128xf32>
    %c0_i32_10 = arith.constant 0 : i32
    %10 = arith.index_cast %c0_i32_10 : i32 to index
    %c0_11 = arith.constant 0 : index
    %c0_12 = arith.constant 0 : index
    %11 = vector.load %arg2[%10, %c0_11, %c0_12] : memref<4x2x4xf32, #tpu.memory_space<vmem>>, vector<1x2x4xf32>
    %12 = vector.shape_cast %11 : vector<1x2x4xf32> to vector<2x4xf32>
    %cst = arith.constant dense<0.000000e+00> : vector<2x512xf32>
    %13 = tpu.matmul %12, %3, %cst {dimension_numbers = #tpu.dot_dimension_numbers<[1], [0], [0], [1], [0, 0, 1, 1], [], []>} : vector<2x4xf32>, vector<4x512xf32>, vector<2x512xf32> -> vector<2x512xf32>
    %14 = arith.addf %13, %7 : vector<2x512xf32>
    %cst_13 = arith.constant dense<0.000000e+00> : vector<2x512xf32>
    %15 = tpu.matmul %8, %4, %cst_13 {dimension_numbers = #tpu.dot_dimension_numbers<[1], [0], [0], [1], [0, 0, 1, 1], [], []>} : vector<2x128xf32>, vector<128x512xf32>, vector<2x512xf32> -> vector<2x512xf32>
    %16 = arith.addf %15, %14 : vector<2x512xf32>
    %17 = vector.extract_strided_slice %16 {offsets = [0, 0], sizes = [2, 128], strides = [1, 1]} : vector<2x512xf32> to vector<2x128xf32>
    %18 = arith.negf %17 : vector<2x128xf32>
    %19 = math.exp %18 : vector<2x128xf32>
    %cst_14 = arith.constant 1.000000e+00 : f32
    %20 = vector.broadcast %cst_14 : f32 to vector<2x128xf32>
    %21 = arith.addf %20, %19 : vector<2x128xf32>
    %22 = arith.divf %20, %21 : vector<2x128xf32>
    %23 = vector.extract_strided_slice %16 {offsets = [0, 128], sizes = [2, 128], strides = [1, 1]} : vector<2x512xf32> to vector<2x128xf32>
    %24 = arith.negf %23 : vector<2x128xf32>
    %25 = math.exp %24 : vector<2x128xf32>
    %cst_15 = arith.constant 1.000000e+00 : f32
    %26 = vector.broadcast %cst_15 : f32 to vector<2x128xf32>
    %27 = arith.addf %26, %25 : vector<2x128xf32>
    %28 = arith.divf %26, %27 : vector<2x128xf32>
    %29 = vector.extract_strided_slice %16 {offsets = [0, 256], sizes = [2, 128], strides = [1, 1]} : vector<2x512xf32> to vector<2x128xf32>
    %30 = math.tanh %29 : vector<2x128xf32>
    %31 = vector.extract_strided_slice %16 {offsets = [0, 384], sizes = [2, 128], strides = [1, 1]} : vector<2x512xf32> to vector<2x128xf32>
    %32 = arith.negf %31 : vector<2x128xf32>
    %33 = math.exp %32 : vector<2x128xf32>
    %cst_16 = arith.constant 1.000000e+00 : f32
    %34 = vector.broadcast %cst_16 : f32 to vector<2x128xf32>
    %35 = arith.addf %34, %33 : vector<2x128xf32>
    %36 = arith.divf %34, %35 : vector<2x128xf32>
    %37 = arith.mulf %28, %9 : vector<2x128xf32>
    %38 = arith.mulf %22, %30 : vector<2x128xf32>
    %39 = arith.addf %37, %38 : vector<2x128xf32>
    %40 = math.tanh %39 : vector<2x128xf32>
    %41 = arith.mulf %36, %40 : vector<2x128xf32>
    %c1_i32 = arith.constant 1 : i32
    %42 = arith.index_cast %c1_i32 : i32 to index
    %c0_17 = arith.constant 0 : index
    %c0_18 = arith.constant 0 : index
    %43 = vector.load %arg2[%42, %c0_17, %c0_18] : memref<4x2x4xf32, #tpu.memory_space<vmem>>, vector<1x2x4xf32>
    %44 = vector.shape_cast %43 : vector<1x2x4xf32> to vector<2x4xf32>
    %cst_19 = arith.constant dense<0.000000e+00> : vector<2x512xf32>
    %45 = tpu.matmul %44, %3, %cst_19 {dimension_numbers = #tpu.dot_dimension_numbers<[1], [0], [0], [1], [0, 0, 1, 1], [], []>} : vector<2x4xf32>, vector<4x512xf32>, vector<2x512xf32> -> vector<2x512xf32>
    %46 = arith.addf %45, %7 : vector<2x512xf32>
    %cst_20 = arith.constant dense<0.000000e+00> : vector<2x512xf32>
    %47 = tpu.matmul %41, %4, %cst_20 {dimension_numbers = #tpu.dot_dimension_numbers<[1], [0], [0], [1], [0, 0, 1, 1], [], []>} : vector<2x128xf32>, vector<128x512xf32>, vector<2x512xf32> -> vector<2x512xf32>
    %48 = arith.addf %47, %46 : vector<2x512xf32>
    %49 = vector.extract_strided_slice %48 {offsets = [0, 0], sizes = [2, 128], strides = [1, 1]} : vector<2x512xf32> to vector<2x128xf32>
    %50 = arith.negf %49 : vector<2x128xf32>
    %51 = math.exp %50 : vector<2x128xf32>
    %cst_21 = arith.constant 1.000000e+00 : f32
    %52 = vector.broadcast %cst_21 : f32 to vector<2x128xf32>
    %53 = arith.addf %52, %51 : vector<2x128xf32>
    %54 = arith.divf %52, %53 : vector<2x128xf32>
    %55 = vector.extract_strided_slice %48 {offsets = [0, 128], sizes = [2, 128], strides = [1, 1]} : vector<2x512xf32> to vector<2x128xf32>
    %56 = arith.negf %55 : vector<2x128xf32>
    %57 = math.exp %56 : vector<2x128xf32>
    %cst_22 = arith.constant 1.000000e+00 : f32
    %58 = vector.broadcast %cst_22 : f32 to vector<2x128xf32>
    %59 = arith.addf %58, %57 : vector<2x128xf32>
    %60 = arith.divf %58, %59 : vector<2x128xf32>
    %61 = vector.extract_strided_slice %48 {offsets = [0, 256], sizes = [2, 128], strides = [1, 1]} : vector<2x512xf32> to vector<2x128xf32>
    %62 = math.tanh %61 : vector<2x128xf32>
    %63 = vector.extract_strided_slice %48 {offsets = [0, 384], sizes = [2, 128], strides = [1, 1]} : vector<2x512xf32> to vector<2x128xf32>
    %64 = arith.negf %63 : vector<2x128xf32>
    %65 = math.exp %64 : vector<2x128xf32>
    %cst_23 = arith.constant 1.000000e+00 : f32
    %66 = vector.broadcast %cst_23 : f32 to vector<2x128xf32>
    %67 = arith.addf %66, %65 : vector<2x128xf32>
    %68 = arith.divf %66, %67 : vector<2x128xf32>
    %69 = arith.mulf %60, %39 : vector<2x128xf32>
    %70 = arith.mulf %54, %62 : vector<2x128xf32>
    %71 = arith.addf %69, %70 : vector<2x128xf32>
    %72 = math.tanh %71 : vector<2x128xf32>
    %73 = arith.mulf %68, %72 : vector<2x128xf32>
    %c2_i32 = arith.constant 2 : i32
    %74 = arith.index_cast %c2_i32 : i32 to index
    %c0_24 = arith.constant 0 : index
    %c0_25 = arith.constant 0 : index
    %75 = vector.load %arg2[%74, %c0_24, %c0_25] : memref<4x2x4xf32, #tpu.memory_space<vmem>>, vector<1x2x4xf32>
    %76 = vector.shape_cast %75 : vector<1x2x4xf32> to vector<2x4xf32>
    %cst_26 = arith.constant dense<0.000000e+00> : vector<2x512xf32>
    %77 = tpu.matmul %76, %3, %cst_26 {dimension_numbers = #tpu.dot_dimension_numbers<[1], [0], [0], [1], [0, 0, 1, 1], [], []>} : vector<2x4xf32>, vector<4x512xf32>, vector<2x512xf32> -> vector<2x512xf32>
    %78 = arith.addf %77, %7 : vector<2x512xf32>
    %cst_27 = arith.constant dense<0.000000e+00> : vector<2x512xf32>
    %79 = tpu.matmul %73, %4, %cst_27 {dimension_numbers = #tpu.dot_dimension_numbers<[1], [0], [0], [1], [0, 0, 1, 1], [], []>} : vector<2x128xf32>, vector<128x512xf32>, vector<2x512xf32> -> vector<2x512xf32>
    %80 = arith.addf %79, %78 : vector<2x512xf32>
    %81 = vector.extract_strided_slice %80 {offsets = [0, 0], sizes = [2, 128], strides = [1, 1]} : vector<2x512xf32> to vector<2x128xf32>
    %82 = arith.negf %81 : vector<2x128xf32>
    %83 = math.exp %82 : vector<2x128xf32>
    %cst_28 = arith.constant 1.000000e+00 : f32
    %84 = vector.broadcast %cst_28 : f32 to vector<2x128xf32>
    %85 = arith.addf %84, %83 : vector<2x128xf32>
    %86 = arith.divf %84, %85 : vector<2x128xf32>
    %87 = vector.extract_strided_slice %80 {offsets = [0, 128], sizes = [2, 128], strides = [1, 1]} : vector<2x512xf32> to vector<2x128xf32>
    %88 = arith.negf %87 : vector<2x128xf32>
    %89 = math.exp %88 : vector<2x128xf32>
    %cst_29 = arith.constant 1.000000e+00 : f32
    %90 = vector.broadcast %cst_29 : f32 to vector<2x128xf32>
    %91 = arith.addf %90, %89 : vector<2x128xf32>
    %92 = arith.divf %90, %91 : vector<2x128xf32>
    %93 = vector.extract_strided_slice %80 {offsets = [0, 256], sizes = [2, 128], strides = [1, 1]} : vector<2x512xf32> to vector<2x128xf32>
    %94 = math.tanh %93 : vector<2x128xf32>
    %95 = vector.extract_strided_slice %80 {offsets = [0, 384], sizes = [2, 128], strides = [1, 1]} : vector<2x512xf32> to vector<2x128xf32>
    %96 = arith.negf %95 : vector<2x128xf32>
    %97 = math.exp %96 : vector<2x128xf32>
    %cst_30 = arith.constant 1.000000e+00 : f32
    %98 = vector.broadcast %cst_30 : f32 to vector<2x128xf32>
    %99 = arith.addf %98, %97 : vector<2x128xf32>
    %100 = arith.divf %98, %99 : vector<2x128xf32>
    %101 = arith.mulf %92, %71 : vector<2x128xf32>
    %102 = arith.mulf %86, %94 : vector<2x128xf32>
    %103 = arith.addf %101, %102 : vector<2x128xf32>
    %104 = math.tanh %103 : vector<2x128xf32>
    %105 = arith.mulf %100, %104 : vector<2x128xf32>
    %c3_i32 = arith.constant 3 : i32
    %106 = arith.index_cast %c3_i32 : i32 to index
    %c0_31 = arith.constant 0 : index
    %c0_32 = arith.constant 0 : index
    %107 = vector.load %arg2[%106, %c0_31, %c0_32] : memref<4x2x4xf32, #tpu.memory_space<vmem>>, vector<1x2x4xf32>
    %108 = vector.shape_cast %107 : vector<1x2x4xf32> to vector<2x4xf32>
    %cst_33 = arith.constant dense<0.000000e+00> : vector<2x512xf32>
    %109 = tpu.matmul %108, %3, %cst_33 {dimension_numbers = #tpu.dot_dimension_numbers<[1], [0], [0], [1], [0, 0, 1, 1], [], []>} : vector<2x4xf32>, vector<4x512xf32>, vector<2x512xf32> -> vector<2x512xf32>
    %110 = arith.addf %109, %7 : vector<2x512xf32>
    %cst_34 = arith.constant dense<0.000000e+00> : vector<2x512xf32>
    %111 = tpu.matmul %105, %4, %cst_34 {dimension_numbers = #tpu.dot_dimension_numbers<[1], [0], [0], [1], [0, 0, 1, 1], [], []>} : vector<2x128xf32>, vector<128x512xf32>, vector<2x512xf32> -> vector<2x512xf32>
    %112 = arith.addf %111, %110 : vector<2x512xf32>
    %113 = vector.extract_strided_slice %112 {offsets = [0, 0], sizes = [2, 128], strides = [1, 1]} : vector<2x512xf32> to vector<2x128xf32>
    %114 = arith.negf %113 : vector<2x128xf32>
    %115 = math.exp %114 : vector<2x128xf32>
    %cst_35 = arith.constant 1.000000e+00 : f32
    %116 = vector.broadcast %cst_35 : f32 to vector<2x128xf32>
    %117 = arith.addf %116, %115 : vector<2x128xf32>
    %118 = arith.divf %116, %117 : vector<2x128xf32>
    %119 = vector.extract_strided_slice %112 {offsets = [0, 128], sizes = [2, 128], strides = [1, 1]} : vector<2x512xf32> to vector<2x128xf32>
    %120 = arith.negf %119 : vector<2x128xf32>
    %121 = math.exp %120 : vector<2x128xf32>
    %cst_36 = arith.constant 1.000000e+00 : f32
    %122 = vector.broadcast %cst_36 : f32 to vector<2x128xf32>
    %123 = arith.addf %122, %121 : vector<2x128xf32>
    %124 = arith.divf %122, %123 : vector<2x128xf32>
    %125 = vector.extract_strided_slice %112 {offsets = [0, 256], sizes = [2, 128], strides = [1, 1]} : vector<2x512xf32> to vector<2x128xf32>
    %126 = math.tanh %125 : vector<2x128xf32>
    %127 = vector.extract_strided_slice %112 {offsets = [0, 384], sizes = [2, 128], strides = [1, 1]} : vector<2x512xf32> to vector<2x128xf32>
    %128 = arith.negf %127 : vector<2x128xf32>
    %129 = math.exp %128 : vector<2x128xf32>
    %cst_37 = arith.constant 1.000000e+00 : f32
    %130 = vector.broadcast %cst_37 : f32 to vector<2x128xf32>
    %131 = arith.addf %130, %129 : vector<2x128xf32>
    %132 = arith.divf %130, %131 : vector<2x128xf32>
    %133 = arith.mulf %124, %103 : vector<2x128xf32>
    %134 = arith.mulf %118, %126 : vector<2x128xf32>
    %135 = arith.addf %133, %134 : vector<2x128xf32>
    %136 = math.tanh %135 : vector<2x128xf32>
    %137 = arith.mulf %132, %136 : vector<2x128xf32>
    %c4_i32 = arith.constant 4 : i32
    %c0_38 = arith.constant 0 : index
    %c0_39 = arith.constant 0 : index
    %138 = vector.load %arg12[%c0_38, %c0_39] : memref<2x128xf32, #tpu.memory_space<vmem>>, vector<2x128xf32>
    tpu.vector_store %arg12[%c0_38, %c0_39], %137 {strides = array<i32>} : memref<2x128xf32, #tpu.memory_space<vmem>>, vector<2x128xf32>,
    %c0_40 = arith.constant 0 : index
    %c0_41 = arith.constant 0 : index
    %139 = vector.load %arg13[%c0_40, %c0_41] : memref<2x128xf32, #tpu.memory_space<vmem>>, vector<2x128xf32>
    tpu.vector_store %arg13[%c0_40, %c0_41], %135 {strides = array<i32>} : memref<2x128xf32, #tpu.memory_space<vmem>>, vector<2x128xf32>,
    %c1_i32_42 = arith.constant 1 : i32
    %140 = arith.cmpi eq, %arg1, %c1_i32_42 : i32
    %141 = arith.extui %140 : i1 to i32
    %c0_i32_43 = arith.constant 0 : i32
    %142 = arith.cmpi ne, %141, %c0_i32_43 : i32
    scf.if %142 {
      %c0_44 = arith.constant 0 : index
      %c0_45 = arith.constant 0 : index
      %143 = vector.load %arg11[%c0_44, %c0_45] : memref<2x128xf32, #tpu.memory_space<vmem>>, vector<2x128xf32>
      tpu.vector_store %arg11[%c0_44, %c0_45], %137 {strides = array<i32>} : memref<2x128xf32, #tpu.memory_space<vmem>>, vector<2x128xf32>,
      %c0_46 = arith.constant 0 : index
      %c0_47 = arith.constant 0 : index
      %144 = vector.load %arg8[%c0_46, %c0_47] : memref<128x128xf32, #tpu.memory_space<vmem>>, vector<128x128xf32>
      %cst_48 = arith.constant dense<0.000000e+00> : vector<2x128xf32>
      %145 = tpu.matmul %137, %144, %cst_48 {dimension_numbers = #tpu.dot_dimension_numbers<[1], [0], [0], [1], [0, 0, 1, 1], [], []>} : vector<2x128xf32>, vector<128x128xf32>, vector<2x128xf32> -> vector<2x128xf32>
      %c0_49 = arith.constant 0 : index
      %c0_50 = arith.constant 0 : index
      %146 = vector.load %arg9[%c0_49, %c0_50] : memref<1x128xf32, #tpu.memory_space<vmem>>, vector<1x128xf32>
      %147 = vector.broadcast %146 : vector<1x128xf32> to vector<2x128xf32>
      %148 = arith.addf %145, %147 : vector<2x128xf32>
      %c0_51 = arith.constant 0 : index
      %c0_52 = arith.constant 0 : index
      %149 = vector.load %arg10[%c0_51, %c0_52] : memref<2x128xf32, #tpu.memory_space<vmem>>, vector<2x128xf32>
      tpu.vector_store %arg10[%c0_51, %c0_52], %148 {strides = array<i32>} : memref<2x128xf32, #tpu.memory_space<vmem>>, vector<2x128xf32>,
    } else {
    }
    return
  }
  func.func @transform_0(%arg0: i32, %arg1: i32) -> (i32, i32, i32) {
    %c0_i32 = arith.constant 0 : i32
    %c0_i32_0 = arith.constant 0 : i32
    return %arg1, %arg0, %c0_i32 : i32, i32, i32
  }
  func.func @transform_1(%arg0: i32, %arg1: i32) -> (i32, i32) {
    %c0_i32 = arith.constant 0 : i32
    %c0_i32_0 = arith.constant 0 : i32
    return %arg0, %c0_i32 : i32, i32
  }
  func.func @transform_2(%arg0: i32, %arg1: i32) -> (i32, i32) {
    %c0_i32 = arith.constant 0 : i32
    %c0_i32_0 = arith.constant 0 : i32
    return %arg0, %c0_i32 : i32, i32
  }
  func.func @transform_3(%arg0: i32, %arg1: i32) -> (i32, i32) {
    %c0_i32 = arith.constant 0 : i32
    %c0_i32_0 = arith.constant 0 : i32
    %c0_i32_1 = arith.constant 0 : i32
    return %c0_i32, %c0_i32_0 : i32, i32
  }
  func.func @transform_4(%arg0: i32, %arg1: i32) -> (i32, i32) {
    %c0_i32 = arith.constant 0 : i32
    %c0_i32_0 = arith.constant 0 : i32
    %c0_i32_1 = arith.constant 0 : i32
    return %c0_i32, %c0_i32_0 : i32, i32
  }
  func.func @transform_5(%arg0: i32, %arg1: i32) -> (i32, i32) {
    %c0_i32 = arith.constant 0 : i32
    %c0_i32_0 = arith.constant 0 : i32
    %c0_i32_1 = arith.constant 0 : i32
    return %c0_i32, %c0_i32_0 : i32, i32
  }
  func.func @transform_6(%arg0: i32, %arg1: i32) -> (i32, i32) {
    %c0_i32 = arith.constant 0 : i32
    %c0_i32_0 = arith.constant 0 : i32
    %c0_i32_1 = arith.constant 0 : i32
    return %c0_i32, %c0_i32_0 : i32, i32
  }
  func.func @transform_7(%arg0: i32, %arg1: i32) -> (i32, i32) {
    %c0_i32 = arith.constant 0 : i32
    %c0_i32_0 = arith.constant 0 : i32
    %c0_i32_1 = arith.constant 0 : i32
    return %c0_i32, %c0_i32_0 : i32, i32
  }
  func.func @transform_8(%arg0: i32, %arg1: i32) -> (i32, i32) {
    %c0_i32 = arith.constant 0 : i32
    %c0_i32_0 = arith.constant 0 : i32
    return %arg0, %c0_i32 : i32, i32
  }
  func.func @transform_9(%arg0: i32, %arg1: i32) -> (i32, i32) {
    %c0_i32 = arith.constant 0 : i32
    %c0_i32_0 = arith.constant 0 : i32
    return %arg0, %c0_i32 : i32, i32
  }
}

</mosaic_0001>

<llo_original>
// kernel: tpu_custom_call.1
$region0: #{tpu_custom_call.1}
  #allocation0 [shape = 'u32[]', space=smem, size = 0x4, offset = 0x4, fixed_abs, tag = 'smem constant byte address 0x4 - core index']
  #allocation1 [shape = 'u32[72,128]{1,0:T(1,128)}', space=vmem, size = 0x9000, scoped, tag = 'internal scratch']
  #allocation2 [shape = 'f32[2,128]{1,0:T(2,128)}', space=vmem, size = 0x400, scoped, tag = 'scratch operand']
  #allocation3 [shape = 'f32[2,128]{1,0:T(2,128)}', space=vmem, size = 0x400, scoped, tag = 'scratch operand']
  %s0 = inlined_call_operand.vmem [shape: f32[8,2,4], index: 0, kind: input, shape index: {}]
  %s1 = inlined_call_operand.vmem [shape: f32[2,128], index: 1, kind: input, shape index: {}]
  %s2 = inlined_call_operand.vmem [shape: f32[2,128], index: 2, kind: input, shape index: {}]
  %s3 = inlined_call_operand.vmem [shape: f32[4,512], index: 3, kind: input, shape index: {}]
  %s4 = inlined_call_operand.hbm [shape: f32[128,512], index: 4, kind: input, shape index: {}]
  %s5 = inlined_call_operand.vmem [shape: f32[1,512], index: 5, kind: input, shape index: {}]
  %s6 = inlined_call_operand.hbm [shape: f32[128,128], index: 6, kind: input, shape index: {}]
  %s7 = inlined_call_operand.vmem [shape: f32[1,128], index: 7, kind: input, shape index: {}]
  %s8 = inlined_call_operand.hbm [shape: f32[2,128], index: 8, kind: output, shape index: {0}]
  %s9 = inlined_call_operand.hbm [shape: f32[2,128], index: 9, kind: output, shape index: {1}]
  %10 = xla_tuple %s8, %s9
  %s11 = sld [smem:[#allocation0]]
  $region89: #{tpu_custom_call.1} parent=0
    _
  %s13 = ssub.s32 1, %s11
  %s14 = scalar_select 0, %s13, %s11
  $region1: #{tpu_custom_call.1} parent=0
    #allocation4 [shape = 'u8[262144]{0}', space=vmem, size = 0x40000, scoped, tag = 'input window, operand 4, single buffered']
    #allocation5 [shape = 's32[2]{0}', space=sflag, size = 0x8, scoped, tag = 'scoped memory for tpu_custom_call.1']
    #allocation6 [shape = 's32[2]{0}', space=sflag, size = 0x8, scoped, tag = 'scoped memory for tpu_custom_call.1']
    #allocation7 [shape = 'u8[65536]{0}', space=vmem, size = 0x10000, scoped, tag = 'input window, operand 6, single buffered']
    #allocation8 [shape = 's32[1]{0}', space=sflag, size = 0x4, scoped, tag = 'scoped memory for tpu_custom_call.1']
    #allocation9 [shape = 'u8[1024]{0}', space=vmem, size = 0x400, scoped, tag = 'output window, operand 0, single buffered']
    #allocation10 [shape = 'u8[1024]{0}', space=vmem, size = 0x400, scoped, tag = 'output window, operand 1, single buffered']
    #allocation11 [shape = 's32[1]{0}', space=sflag, size = 0x4, scoped, tag = 'scoped memory for tpu_custom_call.1']
    %15 = vsyncpa [#allocation5], 0
    %16 = vsyncpa [#allocation8], 0
    %17 = vsyncpa [#allocation6], 0
    %18 = vsyncpa [#allocation11], 0
    loop: start=0, step=1, limit=4
    $region2: #{tpu_custom_call.1} parent=1 // loop_pre_header
      _
    $region3: #{tpu_custom_call.1} parent=1 // loop_header
      %s20 = sphi 0, %s24
      %p21 = scmp.ge.s32.totalorder %s20, 4
      %s27 = sphi 0, %s39
      %s28 = sphi 0, %s35
      %s29 = sphi 0, %s27
      %s30 = sphi 0, %s28
      %s31 = sphi 0, %s29
      %s32 = sphi 0, %s30
      %s44 = sphi 0, %s46
      %s47 = sphi 0, %s44
      %s48 = sphi 0, %s47
      %s64 = sphi 0, %s48
      %s70 = sphi 0, %s72
      %s73 = sphi 0, %s70
      %s74 = sphi 0, %s73
      %s90 = sphi 0, %s74
      %s96 = sphi 0, %s98
      %s99 = sphi 0, %s96
      %s100 = sphi 0, %s99
      %s116 = sphi 0, %s100
      %s120 = sphi 0, %s120
      %s122 = sphi 0, %s120
      %s123 = sphi 0, %s122
      %s137 = sphi 0, %s123
      %s141 = sphi 0, %s141
      %s143 = sphi 0, %s141
      %s144 = sphi 0, %s143
      %s158 = sphi 0, %s144
      %s162 = sphi 0, %s162
      %s164 = sphi 0, %s162
      %s165 = sphi 0, %s164
      %s179 = sphi 0, %s165
      %s183 = sphi 0, %s183
      %s185 = sphi 0, %s183
      %s186 = sphi 0, %s185
      %s200 = sphi 0, %s186
      %s204 = sphi 0, %s204
      %s206 = sphi 0, %s204
      %s207 = sphi 0, %s206
      %s221 = sphi 0, %s207
      %s227 = sphi 0, %s229
      %s230 = sphi 0, %s227
      %s231 = sphi 0, %s230
      %s247 = sphi 0, %s231
      %s253 = sphi 0, %s255
      %s256 = sphi 0, %s253
      %s257 = sphi 0, %s256
      %s273 = sphi 0, %s257
    $region4: #{tpu_custom_call.1} parent=1 // loop_header_branch
      %23 = sbr.rel (%p21) target = $region8
    $region5: #{tpu_custom_call.1} parent=1 // loop_body
      %s25 = ssub.s32 %s20, 1
      %s26 = ssub.s32 %s20, 2
      %s33 = sadd.s32 1, %s28
      %p34 = scmp.ge.s32.totalorder %s33, 2
      %s35 = scalar_select %p34, 0, %s33
      %s36 = sadd.s32 1, %s27
      %s37 = scalar_select %p34, %s36, %s27
      %p38 = scmp.ge.s32.totalorder %s37, 1
      %s39 = scalar_select %p38, 0, %s37
      %s40 = ssub.s32 %s28, %s35
      %s41 = ssub.s32 %s27, %s39
      %s42 = sor.u32 %s40, %s41
      %p43 = scmp.eq.s32.totalorder %s42, 0
      %s45 = sadd.s32 %s44, 1
      %s46 = scalar_select %p43, %s44, %s45
      %p49 = pneg %p43
      %p50 = scmp.eq.s32.totalorder %s20, 1
      %p51 = por %p49, %p50
      %p52 = scmp.ne.s32.totalorder %s44, %s47
      %p53 = scmp.eq.s32.totalorder %s20, 0
      %p54 = por %p52, %p53
      %p55 = scmp.ne.s32.totalorder %s44, %s47
      %p56 = scmp.eq.s32.totalorder %s25, 1
      %p57 = por %p55, %p56
      %p58 = scmp.ne.s32.totalorder %s47, %s48
      %p59 = scmp.eq.s32.totalorder %s25, 0
      %p60 = por %p58, %p59
      %p61 = scmp.ne.s32.totalorder %s47, %s48
      %p62 = scmp.eq.s32.totalorder %s26, 1
      %p63 = por %p61, %p62
      %p65 = scmp.ne.s32.totalorder %s48, %s64
      %p66 = scmp.eq.s32.totalorder %s26, 0
      %p67 = por %p65, %p66
      %s68 = ssub.s32 %s27, %s39
      %p69 = scmp.eq.s32.totalorder %s68, 0
      %s71 = sadd.s32 %s70, 1
      %s72 = scalar_select %p69, %s70, %s71
      %p75 = pneg %p69
      %p76 = scmp.eq.s32.totalorder %s20, 1
      %p77 = por %p75, %p76
      %p78 = scmp.ne.s32.totalorder %s70, %s73
      %p79 = scmp.eq.s32.totalorder %s20, 0
      %p80 = por %p78, %p79
      %p81 = scmp.ne.s32.totalorder %s70, %s73
      %p82 = scmp.eq.s32.totalorder %s25, 1
      %p83 = por %p81, %p82
      %p84 = scmp.ne.s32.totalorder %s73, %s74
      %p85 = scmp.eq.s32.totalorder %s25, 0
      %p86 = por %p84, %p85
      %p87 = scmp.ne.s32.totalorder %s73, %s74
      %p88 = scmp.eq.s32.totalorder %s26, 1
      %p89 = por %p87, %p88
      %p91 = scmp.ne.s32.totalorder %s74, %s90
      %p92 = scmp.eq.s32.totalorder %s26, 0
      %p93 = por %p91, %p92
      %s94 = ssub.s32 %s27, %s39
      %p95 = scmp.eq.s32.totalorder %s94, 0
      %s97 = sadd.s32 %s96, 1
      %s98 = scalar_select %p95, %s96, %s97
      %p101 = pneg %p95
      %p102 = scmp.eq.s32.totalorder %s20, 1
      %p103 = por %p101, %p102
      %p104 = scmp.ne.s32.totalorder %s96, %s99
      %p105 = scmp.eq.s32.totalorder %s20, 0
      %p106 = por %p104, %p105
      %p107 = scmp.ne.s32.totalorder %s96, %s99
      %p108 = scmp.eq.s32.totalorder %s25, 1
      %p109 = por %p107, %p108
      %p110 = scmp.ne.s32.totalorder %s99, %s100
      %p111 = scmp.eq.s32.totalorder %s25, 0
      %p112 = por %p110, %p111
      %p113 = scmp.ne.s32.totalorder %s99, %s100
      %p114 = scmp.eq.s32.totalorder %s26, 1
      %p115 = por %p113, %p114
      %p117 = scmp.ne.s32.totalorder %s100, %s116
      %p118 = scmp.eq.s32.totalorder %s26, 0
      %p119 = por %p117, %p118
      %s121 = sadd.s32 %s120, 1
      %p124 = scmp.eq.s32.totalorder %s20, 1
      %p125 = scmp.ne.s32.totalorder %s120, %s122
      %p126 = scmp.eq.s32.totalorder %s20, 0
      %p127 = por %p125, %p126
      %p128 = scmp.ne.s32.totalorder %s120, %s122
      %p129 = scmp.eq.s32.totalorder %s25, 1
      %p130 = por %p128, %p129
      %p131 = scmp.ne.s32.totalorder %s122, %s123
      %p132 = scmp.eq.s32.totalorder %s25, 0
      %p133 = por %p131, %p132
      %p134 = scmp.ne.s32.totalorder %s122, %s123
      %p135 = scmp.eq.s32.totalorder %s26, 1
      %p136 = por %p134, %p135
      %p138 = scmp.ne.s32.totalorder %s123, %s137
      %p139 = scmp.eq.s32.totalorder %s26, 0
      %p140 = por %p138, %p139
      %s142 = sadd.s32 %s141, 1
      %p145 = scmp.eq.s32.totalorder %s20, 1
      %p146 = scmp.ne.s32.totalorder %s141, %s143
      %p147 = scmp.eq.s32.totalorder %s20, 0
      %p148 = por %p146, %p147
      %p149 = scmp.ne.s32.totalorder %s141, %s143
      %p150 = scmp.eq.s32.totalorder %s25, 1
      %p151 = por %p149, %p150
      %p152 = scmp.ne.s32.totalorder %s143, %s144
      %p153 = scmp.eq.s32.totalorder %s25, 0
      %p154 = por %p152, %p153
      %p155 = scmp.ne.s32.totalorder %s143, %s144
      %p156 = scmp.eq.s32.totalorder %s26, 1
      %p157 = por %p155, %p156
      %p159 = scmp.ne.s32.totalorder %s144, %s158
      %p160 = scmp.eq.s32.totalorder %s26, 0
      %p161 = por %p159, %p160
      %s163 = sadd.s32 %s162, 1
      %p166 = scmp.eq.s32.totalorder %s20, 1
      %p167 = scmp.ne.s32.totalorder %s162, %s164
      %p168 = scmp.eq.s32.totalorder %s20, 0
      %p169 = por %p167, %p168
      %p170 = scmp.ne.s32.totalorder %s162, %s164
      %p171 = scmp.eq.s32.totalorder %s25, 1
      %p172 = por %p170, %p171
      %p173 = scmp.ne.s32.totalorder %s164, %s165
      %p174 = scmp.eq.s32.totalorder %s25, 0
      %p175 = por %p173, %p174
      %p176 = scmp.ne.s32.totalorder %s164, %s165
      %p177 = scmp.eq.s32.totalorder %s26, 1
      %p178 = por %p176, %p177
      %p180 = scmp.ne.s32.totalorder %s165, %s179
      %p181 = scmp.eq.s32.totalorder %s26, 0
      %p182 = por %p180, %p181
      %s184 = sadd.s32 %s183, 1
      %p187 = scmp.eq.s32.totalorder %s20, 1
      %p188 = scmp.ne.s32.totalorder %s183, %s185
      %p189 = scmp.eq.s32.totalorder %s20, 0
      %p190 = por %p188, %p189
      %p191 = scmp.ne.s32.totalorder %s183, %s185
      %p192 = scmp.eq.s32.totalorder %s25, 1
      %p193 = por %p191, %p192
      %p194 = scmp.ne.s32.totalorder %s185, %s186
      %p195 = scmp.eq.s32.totalorder %s25, 0
      %p196 = por %p194, %p195
      %p197 = scmp.ne.s32.totalorder %s185, %s186
      %p198 = scmp.eq.s32.totalorder %s26, 1
      %p199 = por %p197, %p198
      %p201 = scmp.ne.s32.totalorder %s186, %s200
      %p202 = scmp.eq.s32.totalorder %s26, 0
      %p203 = por %p201, %p202
      %s205 = sadd.s32 %s204, 1
      %p208 = scmp.eq.s32.totalorder %s20, 1
      %p209 = scmp.ne.s32.totalorder %s204, %s206
      %p210 = scmp.eq.s32.totalorder %s20, 0
      %p211 = por %p209, %p210
      %p212 = scmp.ne.s32.totalorder %s204, %s206
      %p213 = scmp.eq.s32.totalorder %s25, 1
      %p214 = por %p212, %p213
      %p215 = scmp.ne.s32.totalorder %s206, %s207
      %p216 = scmp.eq.s32.totalorder %s25, 0
      %p217 = por %p215, %p216
      %p218 = scmp.ne.s32.totalorder %s206, %s207
      %p219 = scmp.eq.s32.totalorder %s26, 1
      %p220 = por %p218, %p219
      %p222 = scmp.ne.s32.totalorder %s207, %s221
      %p223 = scmp.eq.s32.totalorder %s26, 0
      %p224 = por %p222, %p223
      %s225 = ssub.s32 %s27, %s39
      %p226 = scmp.eq.s32.totalorder %s225, 0
      %s228 = sadd.s32 %s227, 1
      %s229 = scalar_select %p226, %s227, %s228
      %p232 = pneg %p226
      %p233 = scmp.eq.s32.totalorder %s20, 1
      %p234 = por %p232, %p233
      %p235 = scmp.ne.s32.totalorder %s227, %s230
      %p236 = scmp.eq.s32.totalorder %s20, 0
      %p237 = por %p235, %p236
      %p238 = scmp.ne.s32.totalorder %s227, %s230
      %p239 = scmp.eq.s32.totalorder %s25, 1
      %p240 = por %p238, %p239
      %p241 = scmp.ne.s32.totalorder %s230, %s231
      %p242 = scmp.eq.s32.totalorder %s25, 0
      %p243 = por %p241, %p242
      %p244 = scmp.ne.s32.totalorder %s230, %s231
      %p245 = scmp.eq.s32.totalorder %s26, 1
      %p246 = por %p244, %p245
      %p248 = scmp.ne.s32.totalorder %s231, %s247
      %p249 = scmp.eq.s32.totalorder %s26, 0
      %p250 = por %p248, %p249
      %s251 = ssub.s32 %s27, %s39
      %p252 = scmp.eq.s32.totalorder %s251, 0
      %s254 = sadd.s32 %s253, 1
      %s255 = scalar_select %p252, %s253, %s254
      %p258 = pneg %p252
      %p259 = scmp.eq.s32.totalorder %s20, 1
      %p260 = por %p258, %p259
      %p261 = scmp.ne.s32.totalorder %s253, %s256
      %p262 = scmp.eq.s32.totalorder %s20, 0
      %p263 = por %p261, %p262
      %p264 = scmp.ne.s32.totalorder %s253, %s256
      %p265 = scmp.eq.s32.totalorder %s25, 1
      %p266 = por %p264, %p265
      %p267 = scmp.ne.s32.totalorder %s256, %s257
      %p268 = scmp.eq.s32.totalorder %s25, 0
      %p269 = por %p267, %p268
      %p270 = scmp.ne.s32.totalorder %s256, %s257
      %p271 = scmp.eq.s32.totalorder %s26, 1
      %p272 = por %p270, %p271
      %p274 = scmp.ne.s32.totalorder %s257, %s273
      %p275 = scmp.eq.s32.totalorder %s26, 0
      %p276 = por %p274, %p275
      %p277 = scmp.le.s32.totalorder 1, %s20
      %p278 = scmp.lt.s32.totalorder %s20, 3
      %p279 = pnand %p277, %p278
      %p280 = pneg %p279
      // Predicated region
      $region9: #{tpu_custom_call.1} parent=5 // pred_check
        _
      $region10: #{tpu_custom_call.1} parent=5 // pred_check_branch
        %282 = sbr.rel (%p279) target = $region12
      $region11: #{tpu_custom_call.1} parent=5 // pred_region
        %s283 = ssub.s32 %s20, 1
        // Predicated region
        $region13: #{tpu_custom_call.1} parent=11 // pred_check
          %p284 = pneg %p86
        $region14: #{tpu_custom_call.1} parent=11 // pred_check_branch
          %286 = sbr.rel (%p284) target = $region16
        $region15: #{tpu_custom_call.1} parent=11 // pred_region
          %p287 = scmp.lt.s32.totalorder %s29, 0
          %s288 = scalar_select %p287, %s29, 0
          %s289 = smul.addr %s288, 2
          %s290 = scalar_lea.vmem %s1, %s289
        $region16: #{tpu_custom_call.1} parent=11 // pred_fallthru
          _
        // Predicated region
        $region17: #{tpu_custom_call.1} parent=11 // pred_check
          %p291 = pneg %p112
        $region18: #{tpu_custom_call.1} parent=11 // pred_check_branch
          %293 = sbr.rel (%p291) target = $region20
        $region19: #{tpu_custom_call.1} parent=11 // pred_region
          %p294 = scmp.lt.s32.totalorder %s29, 0
          %s295 = scalar_select %p294, %s29, 0
          %s296 = smul.addr %s295, 2
          %s297 = scalar_lea.vmem %s2, %s296
        $region20: #{tpu_custom_call.1} parent=11 // pred_fallthru
          _
        // Predicated region
        $region21: #{tpu_custom_call.1} parent=11 // pred_check
          %p298 = pneg %p133
        $region22: #{tpu_custom_call.1} parent=11 // pred_check_branch
          %300 = sbr.rel (%p298) target = $region24
        $region23: #{tpu_custom_call.1} parent=11 // pred_region
          _
        $region24: #{tpu_custom_call.1} parent=11 // pred_fallthru
          _
        // Predicated region
        $region25: #{tpu_custom_call.1} parent=11 // pred_check
          %p301 = pneg %p154
        $region26: #{tpu_custom_call.1} parent=11 // pred_check_branch
          %303 = sbr.rel (%p301) target = $region28
        $region27: #{tpu_custom_call.1} parent=11 // pred_region
          %305 = vsyncadd [#allocation5], 0
          %s306 = sshll.u32 %s4, 4
          %s307 = int_to_ptr.hbm [resolvable:$true] %s306
          %s308 = sshll.u32 [#allocation4], 4
          %s309 = int_to_ptr.vmem [resolvable:$true] %s308
          %314 = dma.hbm_to_vmem [thread:$0]  %s307, 8192, %s309, [#allocation5], 512, 512, 32
        $region28: #{tpu_custom_call.1} parent=11 // pred_fallthru
          _
        // Predicated region
        $region29: #{tpu_custom_call.1} parent=11 // pred_check
          %p315 = pneg %p175
        $region30: #{tpu_custom_call.1} parent=11 // pred_check_branch
          %317 = sbr.rel (%p315) target = $region32
        $region31: #{tpu_custom_call.1} parent=11 // pred_region
          _
        $region32: #{tpu_custom_call.1} parent=11 // pred_fallthru
          _
        // Predicated region
        $region33: #{tpu_custom_call.1} parent=11 // pred_check
          %p318 = pneg %p196
        $region34: #{tpu_custom_call.1} parent=11 // pred_check_branch
          %320 = sbr.rel (%p318) target = $region36
        $region35: #{tpu_custom_call.1} parent=11 // pred_region
          %322 = vsyncadd [#allocation8], 0
          %s323 = sshll.u32 %s6, 4
          %s324 = int_to_ptr.hbm [resolvable:$true] %s323
          %s325 = sshll.u32 [#allocation7], 4
          %s326 = int_to_ptr.vmem [resolvable:$true] %s325
          %331 = dma.hbm_to_vmem [thread:$0]  %s324, 2048, %s326, [#allocation8], 128, 128, 8
        $region36: #{tpu_custom_call.1} parent=11 // pred_fallthru
          _
        // Predicated region
        $region37: #{tpu_custom_call.1} parent=11 // pred_check
          %p332 = pneg %p217
        $region38: #{tpu_custom_call.1} parent=11 // pred_check_branch
          %334 = sbr.rel (%p332) target = $region40
        $region39: #{tpu_custom_call.1} parent=11 // pred_region
          _
        $region40: #{tpu_custom_call.1} parent=11 // pred_fallthru
          _
      $region12: #{tpu_custom_call.1} parent=5 // pred_fallthru
        _
      %p335 = scmp.lt.s32.totalorder %s20, 2
      // Predicated region
      $region41: #{tpu_custom_call.1} parent=5 // pred_check
        %p336 = pneg %p335
      $region42: #{tpu_custom_call.1} parent=5 // pred_check_branch
        %338 = sbr.rel (%p336) target = $region44
      $region43: #{tpu_custom_call.1} parent=5 // pred_region
        // Predicated region
        $region45: #{tpu_custom_call.1} parent=43 // pred_check
          %p339 = pneg %p54
        $region46: #{tpu_custom_call.1} parent=43 // pred_check_branch
          %341 = sbr.rel (%p339) target = $region48
        $region47: #{tpu_custom_call.1} parent=43 // pred_region
          %s342 = smul.u32 4, %s28
          %p343 = scmp.lt.s32.totalorder %s342, 7
          %s344 = scalar_select %p343, %s342, 7
          %p345 = scmp.lt.s32.totalorder %s27, 0
          %s346 = scalar_select %p345, %s27, 0
          %s347 = sadd.s32 %s346, %s344
          %s348 = smul.addr %s347, 2
          %s349 = scalar_lea.vmem %s0, %s348
          %s350 = smul.u32 4, %s28
        $region48: #{tpu_custom_call.1} parent=43 // pred_fallthru
          _
      $region44: #{tpu_custom_call.1} parent=5 // pred_fallthru
        _
      %p351 = scmp.le.s32.totalorder 1, %s20
      %p352 = scmp.lt.s32.totalorder %s20, 3
      %p353 = pnand %p351, %p352
      %p354 = pneg %p353
      // Predicated region
      $region49: #{tpu_custom_call.1} parent=5 // pred_check
        _
      $region50: #{tpu_custom_call.1} parent=5 // pred_check_branch
        %356 = sbr.rel (%p353) target = $region52
      $region51: #{tpu_custom_call.1} parent=5 // pred_region
        %s357 = ssub.s32 %s20, 1
        // Predicated region
        $region53: #{tpu_custom_call.1} parent=51 // pred_check
          %p358 = pneg %p154
        $region54: #{tpu_custom_call.1} parent=51 // pred_check_branch
          %360 = sbr.rel (%p358) target = $region56
        $region55: #{tpu_custom_call.1} parent=51 // pred_region
          %362 = dma.done [#allocation5], 8192
        $region56: #{tpu_custom_call.1} parent=51 // pred_fallthru
          _
        // Predicated region
        $region57: #{tpu_custom_call.1} parent=51 // pred_check
          %p363 = pneg %p196
        $region58: #{tpu_custom_call.1} parent=51 // pred_check_branch
          %365 = sbr.rel (%p363) target = $region60
        $region59: #{tpu_custom_call.1} parent=51 // pred_region
          %367 = dma.done [#allocation8], 2048
        $region60: #{tpu_custom_call.1} parent=51 // pred_fallthru
          _
        %s368 = smul.u32 4, %s30
        %p369 = scmp.lt.s32.totalorder %s368, 7
        %s370 = scalar_select %p369, %s368, 7
        %p371 = scmp.lt.s32.totalorder %s29, 0
        %s372 = scalar_select %p371, %s29, 0
        %s373 = sadd.s32 %s372, %s370
        %s374 = smul.addr %s373, 2
        %s375 = scalar_lea.vmem %s0, %s374
        %p376 = pneg %p60
        %p377 = pneg %p57
        %p378 = scmp.lt.s32.totalorder %s29, 0
        %s379 = scalar_select %p378, %s29, 0
        %s380 = smul.addr %s379, 2
        %s381 = scalar_lea.vmem %s1, %s380
        %p382 = pneg %p86
        %p383 = pneg %p83
        %p384 = scmp.lt.s32.totalorder %s29, 0
        %s385 = scalar_select %p384, %s29, 0
        %s386 = smul.addr %s385, 2
        %s387 = scalar_lea.vmem %s2, %s386
        %p388 = pneg %p112
        %p389 = pneg %p109
        %p390 = pneg %p133
        %p391 = pneg %p130
        %p392 = pneg %p154
        %p393 = pneg %p151
        %p394 = pneg %p175
        %p395 = pneg %p172
        %p396 = pneg %p196
        %p397 = pneg %p193
        %p398 = pneg %p217
        %p399 = pneg %p214
        %p400 = pneg %p243
        %p401 = pneg %p240
        %p402 = pneg %p269
        %p403 = pneg %p266
        %s404 = smul.u32 4, %s30
        %p405 = scmp.lt.s32.totalorder %s404, 7
        %s406 = scalar_select %p405, %s404, 7
        %p407 = scmp.lt.s32.totalorder %s29, 0
        %s408 = scalar_select %p407, %s29, 0
        %s409 = sadd.s32 %s408, %s406
        %s410 = smul.addr %s409, 2
        %s411 = scalar_lea.vmem %s0, %s410
        %s412 = smul.u32 4, %s30
        %p413 = scmp.lt.s32.totalorder %s29, 0
        %s414 = scalar_select %p413, %s29, 0
        %s415 = smul.addr %s414, 2
        %s416 = scalar_lea.vmem %s1, %s415
        %p417 = scmp.lt.s32.totalorder %s29, 0
        %s418 = scalar_select %p417, %s29, 0
        %s419 = smul.addr %s418, 2
        %s420 = scalar_lea.vmem %s2, %s419
        %p421 = scmp.eq.s32.totalorder %s30, 0
        // Predicated region
        $region61: #{tpu_custom_call.1} parent=51 // pred_check
          %p422 = pneg %p421
        $region62: #{tpu_custom_call.1} parent=51 // pred_check_branch
          %424 = sbr.rel (%p422) target = $region64
        $region63: #{tpu_custom_call.1} parent=51 // pred_region
          %v425 = vld [vmem:[%s416] sm:$0x3]
          %426 = vst [vmem:[#allocation2] sm:$0x3] %v425
          %v427 = vld [vmem:[%s420] sm:$0x3]
          %428 = vst [vmem:[#allocation3] sm:$0x3] %v427
        $region64: #{tpu_custom_call.1} parent=51 // pred_fallthru
          _
        %v429 = vld [vmem:[%s3] sm:$0xff]
        %v430 = vld [vmem:[%s3 + $0x8] sm:$0xff]
        %v431 = vld [vmem:[#allocation4] sm:$0xff]
        %v432 = vld [vmem:[#allocation4 + $0x8] sm:$0xff]
        %v433 = vld [vmem:[#allocation4 + $0x10] sm:$0xff]
        %v434 = vld [vmem:[#allocation4 + $0x18] sm:$0xff]
        %v435 = vld [vmem:[#allocation4 + $0x20] sm:$0xff]
        %v436 = vld [vmem:[#allocation4 + $0x28] sm:$0xff]
        %v437 = vld [vmem:[#allocation4 + $0x30] sm:$0xff]
        %v438 = vld [vmem:[#allocation4 + $0x38] sm:$0xff]
        %v439 = vld [vmem:[#allocation4 + $0x40] sm:$0xff]
        %v440 = vld [vmem:[#allocation4 + $0x48] sm:$0xff]
        %v441 = vld [vmem:[#allocation4 + $0x50] sm:$0xff]
        %v442 = vld [vmem:[#allocation4 + $0x58] sm:$0xff]
        %v443 = vld [vmem:[#allocation4 + $0x60] sm:$0xff]
        %v444 = vld [vmem:[#allocation4 + $0x68] sm:$0xff]
        %v445 = vld [vmem:[#allocation4 + $0x70] sm:$0xff]
        %v446 = vld [vmem:[#allocation4 + $0x78] sm:$0xff]
        %v447 = vld [vmem:[#allocation4 + $0x80] sm:$0xff]
        %v448 = vld [vmem:[#allocation4 + $0x88] sm:$0xff]
        %v449 = vld [vmem:[#allocation4 + $0x90] sm:$0xff]
        %v450 = vld [vmem:[#allocation4 + $0x98] sm:$0xff]
        %v451 = vld [vmem:[#allocation4 + $0xa0] sm:$0xff]
        %v452 = vld [vmem:[#allocation4 + $0xa8] sm:$0xff]
        %v453 = vld [vmem:[#allocation4 + $0xb0] sm:$0xff]
        %v454 = vld [vmem:[#allocation4 + $0xb8] sm:$0xff]
        %v455 = vld [vmem:[#allocation4 + $0xc0] sm:$0xff]
        %v456 = vld [vmem:[#allocation4 + $0xc8] sm:$0xff]
        %v457 = vld [vmem:[#allocation4 + $0xd0] sm:$0xff]
        %v458 = vld [vmem:[#allocation4 + $0xd8] sm:$0xff]
        %v459 = vld [vmem:[#allocation4 + $0xe0] sm:$0xff]
        %v460 = vld [vmem:[#allocation4 + $0xe8] sm:$0xff]
        %v461 = vld [vmem:[#allocation4 + $0xf0] sm:$0xff]
        %v462 = vld [vmem:[#allocation4 + $0xf8] sm:$0xff]
        %v463 = vld [vmem:[#allocation4 + $0x100] sm:$0xff]
        %v464 = vld [vmem:[#allocation4 + $0x108] sm:$0xff]
        %v465 = vld [vmem:[#allocation4 + $0x110] sm:$0xff]
        %v466 = vld [vmem:[#allocation4 + $0x118] sm:$0xff]
        %v467 = vld [vmem:[#allocation4 + $0x120] sm:$0xff]
        %v468 = vld [vmem:[#allocation4 + $0x128] sm:$0xff]
        %v469 = vld [vmem:[#allocation4 + $0x130] sm:$0xff]
        %v470 = vld [vmem:[#allocation4 + $0x138] sm:$0xff]
        %v471 = vld [vmem:[#allocation4 + $0x140] sm:$0xff]
        %v472 = vld [vmem:[#allocation4 + $0x148] sm:$0xff]
        %v473 = vld [vmem:[#allocation4 + $0x150] sm:$0xff]
        %v474 = vld [vmem:[#allocation4 + $0x158] sm:$0xff]
        %v475 = vld [vmem:[#allocation4 + $0x160] sm:$0xff]
        %v476 = vld [vmem:[#allocation4 + $0x168] sm:$0xff]
        %v477 = vld [vmem:[#allocation4 + $0x170] sm:$0xff]
        %v478 = vld [vmem:[#allocation4 + $0x178] sm:$0xff]
        %v479 = vld [vmem:[#allocation4 + $0x180] sm:$0xff]
        %v480 = vld [vmem:[#allocation4 + $0x188] sm:$0xff]
        %v481 = vld [vmem:[#allocation4 + $0x190] sm:$0xff]
        %v482 = vld [vmem:[#allocation4 + $0x198] sm:$0xff]
        %v483 = vld [vmem:[#allocation4 + $0x1a0] sm:$0xff]
        %v484 = vld [vmem:[#allocation4 + $0x1a8] sm:$0xff]
        %v485 = vld [vmem:[#allocation4 + $0x1b0] sm:$0xff]
        %v486 = vld [vmem:[#allocation4 + $0x1b8] sm:$0xff]
        %v487 = vld [vmem:[#allocation4 + $0x1c0] sm:$0xff]
        %v488 = vld [vmem:[#allocation4 + $0x1c8] sm:$0xff]
        %v489 = vld [vmem:[#allocation4 + $0x1d0] sm:$0xff]
        %v490 = vld [vmem:[#allocation4 + $0x1d8] sm:$0xff]
        %v491 = vld [vmem:[#allocation4 + $0x1e0] sm:$0xff]
        %v492 = vld [vmem:[#allocation4 + $0x1e8] sm:$0xff]
        %v493 = vld [vmem:[#allocation4 + $0x1f0] sm:$0xff]
        %v494 = vld [vmem:[#allocation4 + $0x1f8] sm:$0xff]
        %v495 = vld [vmem:[%s5] sm:$0xf]
        %v497 = vperm.slane %v495, 0
        %v498 = vperm.slane %v495, 1
        %v499 = vperm.slane %v495, 2
        %v500 = vperm.slane %v495, 3
        %v505 = vld [vmem:[#allocation2] sm:$0x3]
        %v506 = vld [vmem:[#allocation3] sm:$0x3]
        %v507 = vld [vmem:[%s411] sm:$0x3]
        %510 = vst [vmem:[#allocation1] ss:$2 sm:$0xff] %v429
        %s511 = scalar_lea.vmem [#allocation1], 16
        %512 = vst [vmem:[%s511] ss:$2 sm:$0xff] %v430
        %v513 = vld.sshfl [vmem:[#allocation1] sm:$0xff pattern:$0x75316420]
        %v514 = vld.sshfl [vmem:[#allocation1 + $0x8] sm:$0xff pattern:$0x75316420]
        %v515 = vld.sshfl [vmem:[#allocation1 + $0x10] sm:$0xff pattern:$0x75316420]
        %v516 = vld.sshfl [vmem:[#allocation1 + $0x18] sm:$0xff pattern:$0x75316420]
        %vm517 = vcmask 31744
        %v519 = vsel %vm517, %v507, 0
        %vm521 = vcmask 1043456
        %v522 = vsel %vm521, %v513, 0
        %v524 = vsel %vm521, %v514, 0
        %v526 = vsel %vm521, %v515, 0
        %v528 = vsel %vm521, %v516, 0
        %530 = vmatpush.msra.mxu0 0.0
        %531 = vmatpush.msra.mxu0 0.0
        %532 = vmatpush.msra.mxu0 0.0
        %533 = vmatpush.msra.mxu0 0.0
        %534 = vmatpush.msra.mxu0 0.0
        %535 = vmatpush.msra.mxu0 0.0
        %536 = vmatpush.msra.mxu0 0.0
        %537 = vmatpush.msra.mxu0 0.0
        %538 = vmatpush.msra.mxu0 0.0
        %539 = vmatpush.msra.mxu0 0.0
        %540 = vmatpush.msra.mxu0 0.0
        %541 = vmatpush.msra.mxu0 0.0
        %542 = vmatpush.msra.mxu0 0.0
        %543 = vmatpush.msra.mxu0 0.0
        %544 = vmatpush.msra.mxu0 0.0
        %545 = vmatpush.msra.mxu0 %v522
        %546 = vmatmul.f32.gmra.mxu0 %v519
        %v547 = vpop.f32.mrf.mxu0
        %v548 = vadd.f32 %v497, %v547
        %549 = vdwg.mxu0
        %550 = vmatpush.msra.mxu0 0.0
        %551 = vmatpush.msra.mxu0 0.0
        %552 = vmatpush.msra.mxu0 0.0
        %553 = vmatpush.msra.mxu0 0.0
        %554 = vmatpush.msra.mxu0 0.0
        %555 = vmatpush.msra.mxu0 0.0
        %556 = vmatpush.msra.mxu0 0.0
        %557 = vmatpush.msra.mxu0 0.0
        %558 = vmatpush.msra.mxu0 0.0
        %559 = vmatpush.msra.mxu0 0.0
        %560 = vmatpush.msra.mxu0 0.0
        %561 = vmatpush.msra.mxu0 0.0
        %562 = vmatpush.msra.mxu0 0.0
        %563 = vmatpush.msra.mxu0 0.0
        %564 = vmatpush.msra.mxu0 0.0
        %565 = vmatpush.msra.mxu0 %v524
        %566 = vmatmul.f32.gmra.mxu0 %v519
        %v567 = vpop.f32.mrf.mxu0
        %v568 = vadd.f32 %v498, %v567
        %569 = vdwg.mxu0
        %570 = vmatpush.msra.mxu0 0.0
        %571 = vmatpush.msra.mxu0 0.0
        %572 = vmatpush.msra.mxu0 0.0
        %573 = vmatpush.msra.mxu0 0.0
        %574 = vmatpush.msra.mxu0 0.0
        %575 = vmatpush.msra.mxu0 0.0
        %576 = vmatpush.msra.mxu0 0.0
        %577 = vmatpush.msra.mxu0 0.0
        %578 = vmatpush.msra.mxu0 0.0
        %579 = vmatpush.msra.mxu0 0.0
        %580 = vmatpush.msra.mxu0 0.0
        %581 = vmatpush.msra.mxu0 0.0
        %582 = vmatpush.msra.mxu0 0.0
        %583 = vmatpush.msra.mxu0 0.0
        %584 = vmatpush.msra.mxu0 0.0
        %585 = vmatpush.msra.mxu0 %v526
        %586 = vmatmul.f32.gmra.mxu0 %v519
        %v587 = vpop.f32.mrf.mxu0
        %v588 = vadd.f32 %v499, %v587
        %589 = vdwg.mxu0
        %590 = vmatpush.msra.mxu0 0.0
        %591 = vmatpush.msra.mxu0 0.0
        %592 = vmatpush.msra.mxu0 0.0
        %593 = vmatpush.msra.mxu0 0.0
        %594 = vmatpush.msra.mxu0 0.0
        %595 = vmatpush.msra.mxu0 0.0
        %596 = vmatpush.msra.mxu0 0.0
        %597 = vmatpush.msra.mxu0 0.0
        %598 = vmatpush.msra.mxu0 0.0
        %599 = vmatpush.msra.mxu0 0.0
        %600 = vmatpush.msra.mxu0 0.0
        %601 = vmatpush.msra.mxu0 0.0
        %602 = vmatpush.msra.mxu0 0.0
        %603 = vmatpush.msra.mxu0 0.0
        %604 = vmatpush.msra.mxu0 0.0
        %605 = vmatpush.msra.mxu0 %v528
        %606 = vmatmul.f32.gmra.mxu0 %v519
        %v607 = vpop.f32.mrf.mxu0
        %v608 = vadd.f32 %v500, %v607
        %609 = vdwg.mxu0
        %610 = vmatpush.msra.mxu0 %v491
        %611 = vmatpush.msra.mxu0 %v487
        %612 = vmatpush.msra.mxu0 %v483
        %613 = vmatpush.msra.mxu0 %v479
        %614 = vmatpush.msra.mxu0 %v475
        %615 = vmatpush.msra.mxu0 %v471
        %616 = vmatpush.msra.mxu0 %v467
        %617 = vmatpush.msra.mxu0 %v463
        %618 = vmatpush.msra.mxu0 %v459
        %619 = vmatpush.msra.mxu0 %v455
        %620 = vmatpush.msra.mxu0 %v451
        %621 = vmatpush.msra.mxu0 %v447
        %622 = vmatpush.msra.mxu0 %v443
        %623 = vmatpush.msra.mxu0 %v439
        %624 = vmatpush.msra.mxu0 %v435
        %625 = vmatpush.msra.mxu0 %v431
        %626 = vmatmul.f32.gmra.mxu0 %v505
        %v627 = vpop.f32.mrf.mxu0
        %v628 = vadd.f32 %v548, %v627
        %629 = vdwg.mxu0
        %630 = vmatpush.msra.mxu0 %v492
        %631 = vmatpush.msra.mxu0 %v488
        %632 = vmatpush.msra.mxu0 %v484
        %633 = vmatpush.msra.mxu0 %v480
        %634 = vmatpush.msra.mxu0 %v476
        %635 = vmatpush.msra.mxu0 %v472
        %636 = vmatpush.msra.mxu0 %v468
        %637 = vmatpush.msra.mxu0 %v464
        %638 = vmatpush.msra.mxu0 %v460
        %639 = vmatpush.msra.mxu0 %v456
        %640 = vmatpush.msra.mxu0 %v452
        %641 = vmatpush.msra.mxu0 %v448
        %642 = vmatpush.msra.mxu0 %v444
        %643 = vmatpush.msra.mxu0 %v440
        %644 = vmatpush.msra.mxu0 %v436
        %645 = vmatpush.msra.mxu0 %v432
        %646 = vmatmul.f32.gmra.mxu0 %v505
        %v647 = vpop.f32.mrf.mxu0
        %v648 = vadd.f32 %v568, %v647
        %649 = vdwg.mxu0
        %650 = vmatpush.msra.mxu0 %v493
        %651 = vmatpush.msra.mxu0 %v489
        %652 = vmatpush.msra.mxu0 %v485
        %653 = vmatpush.msra.mxu0 %v481
        %654 = vmatpush.msra.mxu0 %v477
        %655 = vmatpush.msra.mxu0 %v473
        %656 = vmatpush.msra.mxu0 %v469
        %657 = vmatpush.msra.mxu0 %v465
        %658 = vmatpush.msra.mxu0 %v461
        %659 = vmatpush.msra.mxu0 %v457
        %660 = vmatpush.msra.mxu0 %v453
        %661 = vmatpush.msra.mxu0 %v449
        %662 = vmatpush.msra.mxu0 %v445
        %663 = vmatpush.msra.mxu0 %v441
        %664 = vmatpush.msra.mxu0 %v437
        %665 = vmatpush.msra.mxu0 %v433
        %666 = vmatmul.f32.gmra.mxu0 %v505
        %v667 = vpop.f32.mrf.mxu0
        %v668 = vadd.f32 %v588, %v667
        %669 = vdwg.mxu0
        %670 = vmatpush.msra.mxu0 %v494
        %671 = vmatpush.msra.mxu0 %v490
        %672 = vmatpush.msra.mxu0 %v486
        %673 = vmatpush.msra.mxu0 %v482
        %674 = vmatpush.msra.mxu0 %v478
        %675 = vmatpush.msra.mxu0 %v474
        %676 = vmatpush.msra.mxu0 %v470
        %677 = vmatpush.msra.mxu0 %v466
        %678 = vmatpush.msra.mxu0 %v462
        %679 = vmatpush.msra.mxu0 %v458
        %680 = vmatpush.msra.mxu0 %v454
        %681 = vmatpush.msra.mxu0 %v450
        %682 = vmatpush.msra.mxu0 %v446
        %683 = vmatpush.msra.mxu0 %v442
        %684 = vmatpush.msra.mxu0 %v438
        %685 = vmatpush.msra.mxu0 %v434
        %686 = vmatmul.f32.gmra.mxu0 %v505
        %v687 = vpop.f32.mrf.mxu0
        %v688 = vadd.f32 %v608, %v687
        %689 = vdwg.mxu0
        %v690 = vxor.u32 %v628, 2147483648
        %v691 = vmul.f32 %v690, 1.442695
        %v692 = vpow.pop %v691
        %v693 = vadd.f32 %v692, 1.0
        %v694 = vrcp.pop %v693
        %v695 = vmul.f32 %v693, %v694
        %v696 = vsub.f32 1.0, %v695
        %v697 = vmul.f32 %v694, %v696
        %v698 = vadd.f32 %v694, %v697
        %vm699 = vweird.f32 %v693
        %vm700 = vweird.f32 %v694
        %vm701 = vmor %vm699, %vm700
        %v702 = vsel %vm701, %v694, %v698
        %v703 = vand.u32 2147483647, %v693
        %vm704 = vcmp.eq.f32.partialorder %v703, 8.507059e+37
        %v705 = vand.u32 %v693, 2147483648
        %v706 = vor.u32 1.1754944e-38, %v705
        %v707 = vsel %vm704, %v706, %v702
        %v708 = vmul.f32 1.0, %v707
        %v709 = vxor.u32 %v648, 2147483648
        %v710 = vmul.f32 %v709, 1.442695
        %v711 = vpow.pop %v710
        %v712 = vadd.f32 %v711, 1.0
        %v713 = vrcp.pop %v712
        %v714 = vmul.f32 %v712, %v713
        %v715 = vsub.f32 1.0, %v714
        %v716 = vmul.f32 %v713, %v715
        %v717 = vadd.f32 %v713, %v716
        %vm718 = vweird.f32 %v712
        %vm719 = vweird.f32 %v713
        %vm720 = vmor %vm718, %vm719
        %v721 = vsel %vm720, %v713, %v717
        %v722 = vand.u32 2147483647, %v712
        %vm723 = vcmp.eq.f32.partialorder %v722, 8.507059e+37
        %v724 = vand.u32 %v712, 2147483648
        %v725 = vor.u32 1.1754944e-38, %v724
        %v726 = vsel %vm723, %v725, %v721
        %v727 = vmul.f32 1.0, %v726
        %v728 = vtanh.pop %v668
        %v729 = vxor.u32 %v688, 2147483648
        %v730 = vmul.f32 %v729, 1.442695
        %v731 = vpow.pop %v730
        %v732 = vadd.f32 %v731, 1.0
        %v733 = vrcp.pop %v732
        %v734 = vmul.f32 %v732, %v733
        %v735 = vsub.f32 1.0, %v734
        %v736 = vmul.f32 %v733, %v735
        %v737 = vadd.f32 %v733, %v736
        %vm738 = vweird.f32 %v732
        %vm739 = vweird.f32 %v733
        %vm740 = vmor %vm738, %vm739
        %v741 = vsel %vm740, %v733, %v737
        %v742 = vand.u32 2147483647, %v732
        %vm743 = vcmp.eq.f32.partialorder %v742, 8.507059e+37
        %v744 = vand.u32 %v732, 2147483648
        %v745 = vor.u32 1.1754944e-38, %v744
        %v746 = vsel %vm743, %v745, %v741
        %v747 = vmul.f32 1.0, %v746
        %v748 = vmul.f32 %v727, %v506
        %v749 = vmul.f32 %v708, %v728
        %v750 = vadd.f32 %v748, %v749
        %v751 = vtanh.pop %v750
        %v752 = vmul.f32 %v747, %v751
        %s753 = scalar_lea.vmem %s411, 2
        %v754 = vld [vmem:[%s753] sm:$0x3]
        %755 = vst [vmem:[#allocation1] ss:$2 sm:$0xff] %v429
        %s756 = scalar_lea.vmem [#allocation1], 16
        %757 = vst [vmem:[%s756] ss:$2 sm:$0xff] %v430
        %v758 = vld.sshfl [vmem:[#allocation1] sm:$0xff pattern:$0x75316420]
        %v759 = vld.sshfl [vmem:[#allocation1 + $0x8] sm:$0xff pattern:$0x75316420]
        %v760 = vld.sshfl [vmem:[#allocation1 + $0x10] sm:$0xff pattern:$0x75316420]
        %v761 = vld.sshfl [vmem:[#allocation1 + $0x18] sm:$0xff pattern:$0x75316420]
        %v763 = vsel %vm517, %v754, 0
        %v765 = vsel %vm521, %v758, 0
        %v767 = vsel %vm521, %v759, 0
        %v769 = vsel %vm521, %v760, 0
        %v771 = vsel %vm521, %v761, 0
        %773 = vmatpush.msra.mxu0 0.0
        %774 = vmatpush.msra.mxu0 0.0
        %775 = vmatpush.msra.mxu0 0.0
        %776 = vmatpush.msra.mxu0 0.0
        %777 = vmatpush.msra.mxu0 0.0
        %778 = vmatpush.msra.mxu0 0.0
        %779 = vmatpush.msra.mxu0 0.0
        %780 = vmatpush.msra.mxu0 0.0
        %781 = vmatpush.msra.mxu0 0.0
        %782 = vmatpush.msra.mxu0 0.0
        %783 = vmatpush.msra.mxu0 0.0
        %784 = vmatpush.msra.mxu0 0.0
        %785 = vmatpush.msra.mxu0 0.0
        %786 = vmatpush.msra.mxu0 0.0
        %787 = vmatpush.msra.mxu0 0.0
        %788 = vmatpush.msra.mxu0 %v765
        %789 = vmatmul.f32.gmra.mxu0 %v763
        %v790 = vpop.f32.mrf.mxu0
        %v791 = vadd.f32 %v497, %v790
        %792 = vdwg.mxu0
        %793 = vmatpush.msra.mxu0 0.0
        %794 = vmatpush.msra.mxu0 0.0
        %795 = vmatpush.msra.mxu0 0.0
        %796 = vmatpush.msra.mxu0 0.0
        %797 = vmatpush.msra.mxu0 0.0
        %798 = vmatpush.msra.mxu0 0.0
        %799 = vmatpush.msra.mxu0 0.0
        %800 = vmatpush.msra.mxu0 0.0
        %801 = vmatpush.msra.mxu0 0.0
        %802 = vmatpush.msra.mxu0 0.0
        %803 = vmatpush.msra.mxu0 0.0
        %804 = vmatpush.msra.mxu0 0.0
        %805 = vmatpush.msra.mxu0 0.0
        %806 = vmatpush.msra.mxu0 0.0
        %807 = vmatpush.msra.mxu0 0.0
        %808 = vmatpush.msra.mxu0 %v767
        %809 = vmatmul.f32.gmra.mxu0 %v763
        %v810 = vpop.f32.mrf.mxu0
        %v811 = vadd.f32 %v498, %v810
        %812 = vdwg.mxu0
        %813 = vmatpush.msra.mxu0 0.0
        %814 = vmatpush.msra.mxu0 0.0
        %815 = vmatpush.msra.mxu0 0.0
        %816 = vmatpush.msra.mxu0 0.0
        %817 = vmatpush.msra.mxu0 0.0
        %818 = vmatpush.msra.mxu0 0.0
        %819 = vmatpush.msra.mxu0 0.0
        %820 = vmatpush.msra.mxu0 0.0
        %821 = vmatpush.msra.mxu0 0.0
        %822 = vmatpush.msra.mxu0 0.0
        %823 = vmatpush.msra.mxu0 0.0
        %824 = vmatpush.msra.mxu0 0.0
        %825 = vmatpush.msra.mxu0 0.0
        %826 = vmatpush.msra.mxu0 0.0
        %827 = vmatpush.msra.mxu0 0.0
        %828 = vmatpush.msra.mxu0 %v769
        %829 = vmatmul.f32.gmra.mxu0 %v763
        %v830 = vpop.f32.mrf.mxu0
        %v831 = vadd.f32 %v499, %v830
        %832 = vdwg.mxu0
        %833 = vmatpush.msra.mxu0 0.0
        %834 = vmatpush.msra.mxu0 0.0
        %835 = vmatpush.msra.mxu0 0.0
        %836 = vmatpush.msra.mxu0 0.0
        %837 = vmatpush.msra.mxu0 0.0
        %838 = vmatpush.msra.mxu0 0.0
        %839 = vmatpush.msra.mxu0 0.0
        %840 = vmatpush.msra.mxu0 0.0
        %841 = vmatpush.msra.mxu0 0.0
        %842 = vmatpush.msra.mxu0 0.0
        %843 = vmatpush.msra.mxu0 0.0
        %844 = vmatpush.msra.mxu0 0.0
        %845 = vmatpush.msra.mxu0 0.0
        %846 = vmatpush.msra.mxu0 0.0
        %847 = vmatpush.msra.mxu0 0.0
        %848 = vmatpush.msra.mxu0 %v771
        %849 = vmatmul.f32.gmra.mxu0 %v763
        %v850 = vpop.f32.mrf.mxu0
        %v851 = vadd.f32 %v500, %v850
        %852 = vdwg.mxu0
        %853 = vmatpush.msra.mxu0 %v491
        %854 = vmatpush.msra.mxu0 %v487
        %855 = vmatpush.msra.mxu0 %v483
        %856 = vmatpush.msra.mxu0 %v479
        %857 = vmatpush.msra.mxu0 %v475
        %858 = vmatpush.msra.mxu0 %v471
        %859 = vmatpush.msra.mxu0 %v467
        %860 = vmatpush.msra.mxu0 %v463
        %861 = vmatpush.msra.mxu0 %v459
        %862 = vmatpush.msra.mxu0 %v455
        %863 = vmatpush.msra.mxu0 %v451
        %864 = vmatpush.msra.mxu0 %v447
        %865 = vmatpush.msra.mxu0 %v443
        %866 = vmatpush.msra.mxu0 %v439
        %867 = vmatpush.msra.mxu0 %v435
        %868 = vmatpush.msra.mxu0 %v431
        %869 = vmatmul.f32.gmra.mxu0 %v752
        %v870 = vpop.f32.mrf.mxu0
        %v871 = vadd.f32 %v791, %v870
        %872 = vdwg.mxu0
        %873 = vmatpush.msra.mxu0 %v492
        %874 = vmatpush.msra.mxu0 %v488
        %875 = vmatpush.msra.mxu0 %v484
        %876 = vmatpush.msra.mxu0 %v480
        %877 = vmatpush.msra.mxu0 %v476
        %878 = vmatpush.msra.mxu0 %v472
        %879 = vmatpush.msra.mxu0 %v468
        %880 = vmatpush.msra.mxu0 %v464
        %881 = vmatpush.msra.mxu0 %v460
        %882 = vmatpush.msra.mxu0 %v456
        %883 = vmatpush.msra.mxu0 %v452
        %884 = vmatpush.msra.mxu0 %v448
        %885 = vmatpush.msra.mxu0 %v444
        %886 = vmatpush.msra.mxu0 %v440
        %887 = vmatpush.msra.mxu0 %v436
        %888 = vmatpush.msra.mxu0 %v432
        %889 = vmatmul.f32.gmra.mxu0 %v752
        %v890 = vpop.f32.mrf.mxu0
        %v891 = vadd.f32 %v811, %v890
        %892 = vdwg.mxu0
        %893 = vmatpush.msra.mxu0 %v493
        %894 = vmatpush.msra.mxu0 %v489
        %895 = vmatpush.msra.mxu0 %v485
        %896 = vmatpush.msra.mxu0 %v481
        %897 = vmatpush.msra.mxu0 %v477
        %898 = vmatpush.msra.mxu0 %v473
        %899 = vmatpush.msra.mxu0 %v469
        %900 = vmatpush.msra.mxu0 %v465
        %901 = vmatpush.msra.mxu0 %v461
        %902 = vmatpush.msra.mxu0 %v457
        %903 = vmatpush.msra.mxu0 %v453
        %904 = vmatpush.msra.mxu0 %v449
        %905 = vmatpush.msra.mxu0 %v445
        %906 = vmatpush.msra.mxu0 %v441
        %907 = vmatpush.msra.mxu0 %v437
        %908 = vmatpush.msra.mxu0 %v433
        %909 = vmatmul.f32.gmra.mxu0 %v752
        %v910 = vpop.f32.mrf.mxu0
        %v911 = vadd.f32 %v831, %v910
        %912 = vdwg.mxu0
        %913 = vmatpush.msra.mxu0 %v494
        %914 = vmatpush.msra.mxu0 %v490
        %915 = vmatpush.msra.mxu0 %v486
        %916 = vmatpush.msra.mxu0 %v482
        %917 = vmatpush.msra.mxu0 %v478
        %918 = vmatpush.msra.mxu0 %v474
        %919 = vmatpush.msra.mxu0 %v470
        %920 = vmatpush.msra.mxu0 %v466
        %921 = vmatpush.msra.mxu0 %v462
        %922 = vmatpush.msra.mxu0 %v458
        %923 = vmatpush.msra.mxu0 %v454
        %924 = vmatpush.msra.mxu0 %v450
        %925 = vmatpush.msra.mxu0 %v446
        %926 = vmatpush.msra.mxu0 %v442
        %927 = vmatpush.msra.mxu0 %v438
        %928 = vmatpush.msra.mxu0 %v434
        %929 = vmatmul.f32.gmra.mxu0 %v752
        %v930 = vpop.f32.mrf.mxu0
        %v931 = vadd.f32 %v851, %v930
        %932 = vdwg.mxu0
        %v933 = vxor.u32 %v871, 2147483648
        %v934 = vmul.f32 %v933, 1.442695
        %v935 = vpow.pop %v934
        %v936 = vadd.f32 %v935, 1.0
        %v937 = vrcp.pop %v936
        %v938 = vmul.f32 %v936, %v937
        %v939 = vsub.f32 1.0, %v938
        %v940 = vmul.f32 %v937, %v939
        %v941 = vadd.f32 %v937, %v940
        %vm942 = vweird.f32 %v936
        %vm943 = vweird.f32 %v937
        %vm944 = vmor %vm942, %vm943
        %v945 = vsel %vm944, %v937, %v941
        %v946 = vand.u32 2147483647, %v936
        %vm947 = vcmp.eq.f32.partialorder %v946, 8.507059e+37
        %v948 = vand.u32 %v936, 2147483648
        %v949 = vor.u32 1.1754944e-38, %v948
        %v950 = vsel %vm947, %v949, %v945
        %v951 = vmul.f32 1.0, %v950
        %v952 = vxor.u32 %v891, 2147483648
        %v953 = vmul.f32 %v952, 1.442695
        %v954 = vpow.pop %v953
        %v955 = vadd.f32 %v954, 1.0
        %v956 = vrcp.pop %v955
        %v957 = vmul.f32 %v955, %v956
        %v958 = vsub.f32 1.0, %v957
        %v959 = vmul.f32 %v956, %v958
        %v960 = vadd.f32 %v956, %v959
        %vm961 = vweird.f32 %v955
        %vm962 = vweird.f32 %v956
        %vm963 = vmor %vm961, %vm962
        %v964 = vsel %vm963, %v956, %v960
        %v965 = vand.u32 2147483647, %v955
        %vm966 = vcmp.eq.f32.partialorder %v965, 8.507059e+37
        %v967 = vand.u32 %v955, 2147483648
        %v968 = vor.u32 1.1754944e-38, %v967
        %v969 = vsel %vm966, %v968, %v964
        %v970 = vmul.f32 1.0, %v969
        %v971 = vtanh.pop %v911
        %v972 = vxor.u32 %v931, 2147483648
        %v973 = vmul.f32 %v972, 1.442695
        %v974 = vpow.pop %v973
        %v975 = vadd.f32 %v974, 1.0
        %v976 = vrcp.pop %v975
        %v977 = vmul.f32 %v975, %v976
        %v978 = vsub.f32 1.0, %v977
        %v979 = vmul.f32 %v976, %v978
        %v980 = vadd.f32 %v976, %v979
        %vm981 = vweird.f32 %v975
        %vm982 = vweird.f32 %v976
        %vm983 = vmor %vm981, %vm982
        %v984 = vsel %vm983, %v976, %v980
        %v985 = vand.u32 2147483647, %v975
        %vm986 = vcmp.eq.f32.partialorder %v985, 8.507059e+37
        %v987 = vand.u32 %v975, 2147483648
        %v988 = vor.u32 1.1754944e-38, %v987
        %v989 = vsel %vm986, %v988, %v984
        %v990 = vmul.f32 1.0, %v989
        %v991 = vmul.f32 %v970, %v750
        %v992 = vmul.f32 %v951, %v971
        %v993 = vadd.f32 %v991, %v992
        %v994 = vtanh.pop %v993
        %v995 = vmul.f32 %v990, %v994
        %s996 = scalar_lea.vmem %s411, 4
        %v997 = vld [vmem:[%s996] sm:$0x3]
        %998 = vst [vmem:[#allocation1] ss:$2 sm:$0xff] %v429
        %s999 = scalar_lea.vmem [#allocation1], 16
        %1000 = vst [vmem:[%s999] ss:$2 sm:$0xff] %v430
        %v1001 = vld.sshfl [vmem:[#allocation1] sm:$0xff pattern:$0x75316420]
        %v1002 = vld.sshfl [vmem:[#allocation1 + $0x8] sm:$0xff pattern:$0x75316420]
        %v1003 = vld.sshfl [vmem:[#allocation1 + $0x10] sm:$0xff pattern:$0x75316420]
        %v1004 = vld.sshfl [vmem:[#allocation1 + $0x18] sm:$0xff pattern:$0x75316420]
        %v1006 = vsel %vm517, %v997, 0
        %v1008 = vsel %vm521, %v1001, 0
        %v1010 = vsel %vm521, %v1002, 0
        %v1012 = vsel %vm521, %v1003, 0
        %v1014 = vsel %vm521, %v1004, 0
        %1016 = vmatpush.msra.mxu0 0.0
        %1017 = vmatpush.msra.mxu0 0.0
        %1018 = vmatpush.msra.mxu0 0.0
        %1019 = vmatpush.msra.mxu0 0.0
        %1020 = vmatpush.msra.mxu0 0.0
        %1021 = vmatpush.msra.mxu0 0.0
        %1022 = vmatpush.msra.mxu0 0.0
        %1023 = vmatpush.msra.mxu0 0.0
        %1024 = vmatpush.msra.mxu0 0.0
        %1025 = vmatpush.msra.mxu0 0.0
        %1026 = vmatpush.msra.mxu0 0.0
        %1027 = vmatpush.msra.mxu0 0.0
        %1028 = vmatpush.msra.mxu0 0.0
        %1029 = vmatpush.msra.mxu0 0.0
        %1030 = vmatpush.msra.mxu0 0.0
        %1031 = vmatpush.msra.mxu0 %v1008
        %1032 = vmatmul.f32.gmra.mxu0 %v1006
        %v1033 = vpop.f32.mrf.mxu0
        %v1034 = vadd.f32 %v497, %v1033
        %1035 = vdwg.mxu0
        %1036 = vmatpush.msra.mxu0 0.0
        %1037 = vmatpush.msra.mxu0 0.0
        %1038 = vmatpush.msra.mxu0 0.0
        %1039 = vmatpush.msra.mxu0 0.0
        %1040 = vmatpush.msra.mxu0 0.0
        %1041 = vmatpush.msra.mxu0 0.0
        %1042 = vmatpush.msra.mxu0 0.0
        %1043 = vmatpush.msra.mxu0 0.0
        %1044 = vmatpush.msra.mxu0 0.0
        %1045 = vmatpush.msra.mxu0 0.0
        %1046 = vmatpush.msra.mxu0 0.0
        %1047 = vmatpush.msra.mxu0 0.0
        %1048 = vmatpush.msra.mxu0 0.0
        %1049 = vmatpush.msra.mxu0 0.0
        %1050 = vmatpush.msra.mxu0 0.0
        %1051 = vmatpush.msra.mxu0 %v1010
        %1052 = vmatmul.f32.gmra.mxu0 %v1006
        %v1053 = vpop.f32.mrf.mxu0
        %v1054 = vadd.f32 %v498, %v1053
        %1055 = vdwg.mxu0
        %1056 = vmatpush.msra.mxu0 0.0
        %1057 = vmatpush.msra.mxu0 0.0
        %1058 = vmatpush.msra.mxu0 0.0
        %1059 = vmatpush.msra.mxu0 0.0
        %1060 = vmatpush.msra.mxu0 0.0
        %1061 = vmatpush.msra.mxu0 0.0
        %1062 = vmatpush.msra.mxu0 0.0
        %1063 = vmatpush.msra.mxu0 0.0
        %1064 = vmatpush.msra.mxu0 0.0
        %1065 = vmatpush.msra.mxu0 0.0
        %1066 = vmatpush.msra.mxu0 0.0
        %1067 = vmatpush.msra.mxu0 0.0
        %1068 = vmatpush.msra.mxu0 0.0
        %1069 = vmatpush.msra.mxu0 0.0
        %1070 = vmatpush.msra.mxu0 0.0
        %1071 = vmatpush.msra.mxu0 %v1012
        %1072 = vmatmul.f32.gmra.mxu0 %v1006
        %v1073 = vpop.f32.mrf.mxu0
        %v1074 = vadd.f32 %v499, %v1073
        %1075 = vdwg.mxu0
        %1076 = vmatpush.msra.mxu0 0.0
        %1077 = vmatpush.msra.mxu0 0.0
        %1078 = vmatpush.msra.mxu0 0.0
        %1079 = vmatpush.msra.mxu0 0.0
        %1080 = vmatpush.msra.mxu0 0.0
        %1081 = vmatpush.msra.mxu0 0.0
        %1082 = vmatpush.msra.mxu0 0.0
        %1083 = vmatpush.msra.mxu0 0.0
        %1084 = vmatpush.msra.mxu0 0.0
        %1085 = vmatpush.msra.mxu0 0.0
        %1086 = vmatpush.msra.mxu0 0.0
        %1087 = vmatpush.msra.mxu0 0.0
        %1088 = vmatpush.msra.mxu0 0.0
        %1089 = vmatpush.msra.mxu0 0.0
        %1090 = vmatpush.msra.mxu0 0.0
        %1091 = vmatpush.msra.mxu0 %v1014
        %1092 = vmatmul.f32.gmra.mxu0 %v1006
        %v1093 = vpop.f32.mrf.mxu0
        %v1094 = vadd.f32 %v500, %v1093
        %1095 = vdwg.mxu0
        %1096 = vmatpush.msra.mxu0 %v491
        %1097 = vmatpush.msra.mxu0 %v487
        %1098 = vmatpush.msra.mxu0 %v483
        %1099 = vmatpush.msra.mxu0 %v479
        %1100 = vmatpush.msra.mxu0 %v475
        %1101 = vmatpush.msra.mxu0 %v471
        %1102 = vmatpush.msra.mxu0 %v467
        %1103 = vmatpush.msra.mxu0 %v463
        %1104 = vmatpush.msra.mxu0 %v459
        %1105 = vmatpush.msra.mxu0 %v455
        %1106 = vmatpush.msra.mxu0 %v451
        %1107 = vmatpush.msra.mxu0 %v447
        %1108 = vmatpush.msra.mxu0 %v443
        %1109 = vmatpush.msra.mxu0 %v439
        %1110 = vmatpush.msra.mxu0 %v435
        %1111 = vmatpush.msra.mxu0 %v431
        %1112 = vmatmul.f32.gmra.mxu0 %v995
        %v1113 = vpop.f32.mrf.mxu0
        %v1114 = vadd.f32 %v1034, %v1113
        %1115 = vdwg.mxu0
        %1116 = vmatpush.msra.mxu0 %v492
        %1117 = vmatpush.msra.mxu0 %v488
        %1118 = vmatpush.msra.mxu0 %v484
        %1119 = vmatpush.msra.mxu0 %v480
        %1120 = vmatpush.msra.mxu0 %v476
        %1121 = vmatpush.msra.mxu0 %v472
        %1122 = vmatpush.msra.mxu0 %v468
        %1123 = vmatpush.msra.mxu0 %v464
        %1124 = vmatpush.msra.mxu0 %v460
        %1125 = vmatpush.msra.mxu0 %v456
        %1126 = vmatpush.msra.mxu0 %v452
        %1127 = vmatpush.msra.mxu0 %v448
        %1128 = vmatpush.msra.mxu0 %v444
        %1129 = vmatpush.msra.mxu0 %v440
        %1130 = vmatpush.msra.mxu0 %v436
        %1131 = vmatpush.msra.mxu0 %v432
        %1132 = vmatmul.f32.gmra.mxu0 %v995
        %v1133 = vpop.f32.mrf.mxu0
        %v1134 = vadd.f32 %v1054, %v1133
        %1135 = vdwg.mxu0
        %1136 = vmatpush.msra.mxu0 %v493
        %1137 = vmatpush.msra.mxu0 %v489
        %1138 = vmatpush.msra.mxu0 %v485
        %1139 = vmatpush.msra.mxu0 %v481
        %1140 = vmatpush.msra.mxu0 %v477
        %1141 = vmatpush.msra.mxu0 %v473
        %1142 = vmatpush.msra.mxu0 %v469
        %1143 = vmatpush.msra.mxu0 %v465
        %1144 = vmatpush.msra.mxu0 %v461
        %1145 = vmatpush.msra.mxu0 %v457
        %1146 = vmatpush.msra.mxu0 %v453
        %1147 = vmatpush.msra.mxu0 %v449
        %1148 = vmatpush.msra.mxu0 %v445
        %1149 = vmatpush.msra.mxu0 %v441
        %1150 = vmatpush.msra.mxu0 %v437
        %1151 = vmatpush.msra.mxu0 %v433
        %1152 = vmatmul.f32.gmra.mxu0 %v995
        %v1153 = vpop.f32.mrf.mxu0
        %v1154 = vadd.f32 %v1074, %v1153
        %1155 = vdwg.mxu0
        %1156 = vmatpush.msra.mxu0 %v494
        %1157 = vmatpush.msra.mxu0 %v490
        %1158 = vmatpush.msra.mxu0 %v486
        %1159 = vmatpush.msra.mxu0 %v482
        %1160 = vmatpush.msra.mxu0 %v478
        %1161 = vmatpush.msra.mxu0 %v474
        %1162 = vmatpush.msra.mxu0 %v470
        %1163 = vmatpush.msra.mxu0 %v466
        %1164 = vmatpush.msra.mxu0 %v462
        %1165 = vmatpush.msra.mxu0 %v458
        %1166 = vmatpush.msra.mxu0 %v454
        %1167 = vmatpush.msra.mxu0 %v450
        %1168 = vmatpush.msra.mxu0 %v446
        %1169 = vmatpush.msra.mxu0 %v442
        %1170 = vmatpush.msra.mxu0 %v438
        %1171 = vmatpush.msra.mxu0 %v434
        %1172 = vmatmul.f32.gmra.mxu0 %v995
        %v1173 = vpop.f32.mrf.mxu0
        %v1174 = vadd.f32 %v1094, %v1173
        %1175 = vdwg.mxu0
        %v1176 = vxor.u32 %v1114, 2147483648
        %v1177 = vmul.f32 %v1176, 1.442695
        %v1178 = vpow.pop %v1177
        %v1179 = vadd.f32 %v1178, 1.0
        %v1180 = vrcp.pop %v1179
        %v1181 = vmul.f32 %v1179, %v1180
        %v1182 = vsub.f32 1.0, %v1181
        %v1183 = vmul.f32 %v1180, %v1182
        %v1184 = vadd.f32 %v1180, %v1183
        %vm1185 = vweird.f32 %v1179
        %vm1186 = vweird.f32 %v1180
        %vm1187 = vmor %vm1185, %vm1186
        %v1188 = vsel %vm1187, %v1180, %v1184
        %v1189 = vand.u32 2147483647, %v1179
        %vm1190 = vcmp.eq.f32.partialorder %v1189, 8.507059e+37
        %v1191 = vand.u32 %v1179, 2147483648
        %v1192 = vor.u32 1.1754944e-38, %v1191
        %v1193 = vsel %vm1190, %v1192, %v1188
        %v1194 = vmul.f32 1.0, %v1193
        %v1195 = vxor.u32 %v1134, 2147483648
        %v1196 = vmul.f32 %v1195, 1.442695
        %v1197 = vpow.pop %v1196
        %v1198 = vadd.f32 %v1197, 1.0
        %v1199 = vrcp.pop %v1198
        %v1200 = vmul.f32 %v1198, %v1199
        %v1201 = vsub.f32 1.0, %v1200
        %v1202 = vmul.f32 %v1199, %v1201
        %v1203 = vadd.f32 %v1199, %v1202
        %vm1204 = vweird.f32 %v1198
        %vm1205 = vweird.f32 %v1199
        %vm1206 = vmor %vm1204, %vm1205
        %v1207 = vsel %vm1206, %v1199, %v1203
        %v1208 = vand.u32 2147483647, %v1198
        %vm1209 = vcmp.eq.f32.partialorder %v1208, 8.507059e+37
        %v1210 = vand.u32 %v1198, 2147483648
        %v1211 = vor.u32 1.1754944e-38, %v1210
        %v1212 = vsel %vm1209, %v1211, %v1207
        %v1213 = vmul.f32 1.0, %v1212
        %v1214 = vtanh.pop %v1154
        %v1215 = vxor.u32 %v1174, 2147483648
        %v1216 = vmul.f32 %v1215, 1.442695
        %v1217 = vpow.pop %v1216
        %v1218 = vadd.f32 %v1217, 1.0
        %v1219 = vrcp.pop %v1218
        %v1220 = vmul.f32 %v1218, %v1219
        %v1221 = vsub.f32 1.0, %v1220
        %v1222 = vmul.f32 %v1219, %v1221
        %v1223 = vadd.f32 %v1219, %v1222
        %vm1224 = vweird.f32 %v1218
        %vm1225 = vweird.f32 %v1219
        %vm1226 = vmor %vm1224, %vm1225
        %v1227 = vsel %vm1226, %v1219, %v1223
        %v1228 = vand.u32 2147483647, %v1218
        %vm1229 = vcmp.eq.f32.partialorder %v1228, 8.507059e+37
        %v1230 = vand.u32 %v1218, 2147483648
        %v1231 = vor.u32 1.1754944e-38, %v1230
        %v1232 = vsel %vm1229, %v1231, %v1227
        %v1233 = vmul.f32 1.0, %v1232
        %v1234 = vmul.f32 %v1213, %v993
        %v1235 = vmul.f32 %v1194, %v1214
        %v1236 = vadd.f32 %v1234, %v1235
        %v1237 = vtanh.pop %v1236
        %v1238 = vmul.f32 %v1233, %v1237
        %s1239 = scalar_lea.vmem %s411, 6
        %v1240 = vld [vmem:[%s1239] sm:$0x3]
        %1241 = vst [vmem:[#allocation1] ss:$2 sm:$0xff] %v429
        %s1242 = scalar_lea.vmem [#allocation1], 16
        %1243 = vst [vmem:[%s1242] ss:$2 sm:$0xff] %v430
        %v1244 = vld.sshfl [vmem:[#allocation1] sm:$0xff pattern:$0x75316420]
        %v1245 = vld.sshfl [vmem:[#allocation1 + $0x8] sm:$0xff pattern:$0x75316420]
        %v1246 = vld.sshfl [vmem:[#allocation1 + $0x10] sm:$0xff pattern:$0x75316420]
        %v1247 = vld.sshfl [vmem:[#allocation1 + $0x18] sm:$0xff pattern:$0x75316420]
        %v1249 = vsel %vm517, %v1240, 0
        %v1251 = vsel %vm521, %v1244, 0
        %v1253 = vsel %vm521, %v1245, 0
        %v1255 = vsel %vm521, %v1246, 0
        %v1257 = vsel %vm521, %v1247, 0
        %1259 = vmatpush.msra.mxu0 0.0
        %1260 = vmatpush.msra.mxu0 0.0
        %1261 = vmatpush.msra.mxu0 0.0
        %1262 = vmatpush.msra.mxu0 0.0
        %1263 = vmatpush.msra.mxu0 0.0
        %1264 = vmatpush.msra.mxu0 0.0
        %1265 = vmatpush.msra.mxu0 0.0
        %1266 = vmatpush.msra.mxu0 0.0
        %1267 = vmatpush.msra.mxu0 0.0
        %1268 = vmatpush.msra.mxu0 0.0
        %1269 = vmatpush.msra.mxu0 0.0
        %1270 = vmatpush.msra.mxu0 0.0
        %1271 = vmatpush.msra.mxu0 0.0
        %1272 = vmatpush.msra.mxu0 0.0
        %1273 = vmatpush.msra.mxu0 0.0
        %1274 = vmatpush.msra.mxu0 %v1251
        %1275 = vmatmul.f32.gmra.mxu0 %v1249
        %v1276 = vpop.f32.mrf.mxu0
        %v1277 = vadd.f32 %v497, %v1276
        %1278 = vdwg.mxu0
        %1279 = vmatpush.msra.mxu0 0.0
        %1280 = vmatpush.msra.mxu0 0.0
        %1281 = vmatpush.msra.mxu0 0.0
        %1282 = vmatpush.msra.mxu0 0.0
        %1283 = vmatpush.msra.mxu0 0.0
        %1284 = vmatpush.msra.mxu0 0.0
        %1285 = vmatpush.msra.mxu0 0.0
        %1286 = vmatpush.msra.mxu0 0.0
        %1287 = vmatpush.msra.mxu0 0.0
        %1288 = vmatpush.msra.mxu0 0.0
        %1289 = vmatpush.msra.mxu0 0.0
        %1290 = vmatpush.msra.mxu0 0.0
        %1291 = vmatpush.msra.mxu0 0.0
        %1292 = vmatpush.msra.mxu0 0.0
        %1293 = vmatpush.msra.mxu0 0.0
        %1294 = vmatpush.msra.mxu0 %v1253
        %1295 = vmatmul.f32.gmra.mxu0 %v1249
        %v1296 = vpop.f32.mrf.mxu0
        %v1297 = vadd.f32 %v498, %v1296
        %1298 = vdwg.mxu0
        %1299 = vmatpush.msra.mxu0 0.0
        %1300 = vmatpush.msra.mxu0 0.0
        %1301 = vmatpush.msra.mxu0 0.0
        %1302 = vmatpush.msra.mxu0 0.0
        %1303 = vmatpush.msra.mxu0 0.0
        %1304 = vmatpush.msra.mxu0 0.0
        %1305 = vmatpush.msra.mxu0 0.0
        %1306 = vmatpush.msra.mxu0 0.0
        %1307 = vmatpush.msra.mxu0 0.0
        %1308 = vmatpush.msra.mxu0 0.0
        %1309 = vmatpush.msra.mxu0 0.0
        %1310 = vmatpush.msra.mxu0 0.0
        %1311 = vmatpush.msra.mxu0 0.0
        %1312 = vmatpush.msra.mxu0 0.0
        %1313 = vmatpush.msra.mxu0 0.0
        %1314 = vmatpush.msra.mxu0 %v1255
        %1315 = vmatmul.f32.gmra.mxu0 %v1249
        %v1316 = vpop.f32.mrf.mxu0
        %v1317 = vadd.f32 %v499, %v1316
        %1318 = vdwg.mxu0
        %1319 = vmatpush.msra.mxu0 0.0
        %1320 = vmatpush.msra.mxu0 0.0
        %1321 = vmatpush.msra.mxu0 0.0
        %1322 = vmatpush.msra.mxu0 0.0
        %1323 = vmatpush.msra.mxu0 0.0
        %1324 = vmatpush.msra.mxu0 0.0
        %1325 = vmatpush.msra.mxu0 0.0
        %1326 = vmatpush.msra.mxu0 0.0
        %1327 = vmatpush.msra.mxu0 0.0
        %1328 = vmatpush.msra.mxu0 0.0
        %1329 = vmatpush.msra.mxu0 0.0
        %1330 = vmatpush.msra.mxu0 0.0
        %1331 = vmatpush.msra.mxu0 0.0
        %1332 = vmatpush.msra.mxu0 0.0
        %1333 = vmatpush.msra.mxu0 0.0
        %1334 = vmatpush.msra.mxu0 %v1257
        %1335 = vmatmul.f32.gmra.mxu0 %v1249
        %v1336 = vpop.f32.mrf.mxu0
        %v1337 = vadd.f32 %v500, %v1336
        %1338 = vdwg.mxu0
        %1339 = vmatpush.msra.mxu0 %v491
        %1340 = vmatpush.msra.mxu0 %v487
        %1341 = vmatpush.msra.mxu0 %v483
        %1342 = vmatpush.msra.mxu0 %v479
        %1343 = vmatpush.msra.mxu0 %v475
        %1344 = vmatpush.msra.mxu0 %v471
        %1345 = vmatpush.msra.mxu0 %v467
        %1346 = vmatpush.msra.mxu0 %v463
        %1347 = vmatpush.msra.mxu0 %v459
        %1348 = vmatpush.msra.mxu0 %v455
        %1349 = vmatpush.msra.mxu0 %v451
        %1350 = vmatpush.msra.mxu0 %v447
        %1351 = vmatpush.msra.mxu0 %v443
        %1352 = vmatpush.msra.mxu0 %v439
        %1353 = vmatpush.msra.mxu0 %v435
        %1354 = vmatpush.msra.mxu0 %v431
        %1355 = vmatmul.f32.gmra.mxu0 %v1238
        %v1356 = vpop.f32.mrf.mxu0
        %v1357 = vadd.f32 %v1277, %v1356
        %1358 = vdwg.mxu0
        %1359 = vmatpush.msra.mxu0 %v492
        %1360 = vmatpush.msra.mxu0 %v488
        %1361 = vmatpush.msra.mxu0 %v484
        %1362 = vmatpush.msra.mxu0 %v480
        %1363 = vmatpush.msra.mxu0 %v476
        %1364 = vmatpush.msra.mxu0 %v472
        %1365 = vmatpush.msra.mxu0 %v468
        %1366 = vmatpush.msra.mxu0 %v464
        %1367 = vmatpush.msra.mxu0 %v460
        %1368 = vmatpush.msra.mxu0 %v456
        %1369 = vmatpush.msra.mxu0 %v452
        %1370 = vmatpush.msra.mxu0 %v448
        %1371 = vmatpush.msra.mxu0 %v444
        %1372 = vmatpush.msra.mxu0 %v440
        %1373 = vmatpush.msra.mxu0 %v436
        %1374 = vmatpush.msra.mxu0 %v432
        %1375 = vmatmul.f32.gmra.mxu0 %v1238
        %v1376 = vpop.f32.mrf.mxu0
        %v1377 = vadd.f32 %v1297, %v1376
        %1378 = vdwg.mxu0
        %1379 = vmatpush.msra.mxu0 %v493
        %1380 = vmatpush.msra.mxu0 %v489
        %1381 = vmatpush.msra.mxu0 %v485
        %1382 = vmatpush.msra.mxu0 %v481
        %1383 = vmatpush.msra.mxu0 %v477
        %1384 = vmatpush.msra.mxu0 %v473
        %1385 = vmatpush.msra.mxu0 %v469
        %1386 = vmatpush.msra.mxu0 %v465
        %1387 = vmatpush.msra.mxu0 %v461
        %1388 = vmatpush.msra.mxu0 %v457
        %1389 = vmatpush.msra.mxu0 %v453
        %1390 = vmatpush.msra.mxu0 %v449
        %1391 = vmatpush.msra.mxu0 %v445
        %1392 = vmatpush.msra.mxu0 %v441
        %1393 = vmatpush.msra.mxu0 %v437
        %1394 = vmatpush.msra.mxu0 %v433
        %1395 = vmatmul.f32.gmra.mxu0 %v1238
        %v1396 = vpop.f32.mrf.mxu0
        %v1397 = vadd.f32 %v1317, %v1396
        %1398 = vdwg.mxu0
        %1399 = vmatpush.msra.mxu0 %v494
        %1400 = vmatpush.msra.mxu0 %v490
        %1401 = vmatpush.msra.mxu0 %v486
        %1402 = vmatpush.msra.mxu0 %v482
        %1403 = vmatpush.msra.mxu0 %v478
        %1404 = vmatpush.msra.mxu0 %v474
        %1405 = vmatpush.msra.mxu0 %v470
        %1406 = vmatpush.msra.mxu0 %v466
        %1407 = vmatpush.msra.mxu0 %v462
        %1408 = vmatpush.msra.mxu0 %v458
        %1409 = vmatpush.msra.mxu0 %v454
        %1410 = vmatpush.msra.mxu0 %v450
        %1411 = vmatpush.msra.mxu0 %v446
        %1412 = vmatpush.msra.mxu0 %v442
        %1413 = vmatpush.msra.mxu0 %v438
        %1414 = vmatpush.msra.mxu0 %v434
        %1415 = vmatmul.f32.gmra.mxu0 %v1238
        %v1416 = vpop.f32.mrf.mxu0
        %v1417 = vadd.f32 %v1337, %v1416
        %1418 = vdwg.mxu0
        %v1419 = vxor.u32 %v1357, 2147483648
        %v1420 = vmul.f32 %v1419, 1.442695
        %v1421 = vpow.pop %v1420
        %v1422 = vadd.f32 %v1421, 1.0
        %v1423 = vrcp.pop %v1422
        %v1424 = vmul.f32 %v1422, %v1423
        %v1425 = vsub.f32 1.0, %v1424
        %v1426 = vmul.f32 %v1423, %v1425
        %v1427 = vadd.f32 %v1423, %v1426
        %vm1428 = vweird.f32 %v1422
        %vm1429 = vweird.f32 %v1423
        %vm1430 = vmor %vm1428, %vm1429
        %v1431 = vsel %vm1430, %v1423, %v1427
        %v1432 = vand.u32 2147483647, %v1422
        %vm1433 = vcmp.eq.f32.partialorder %v1432, 8.507059e+37
        %v1434 = vand.u32 %v1422, 2147483648
        %v1435 = vor.u32 1.1754944e-38, %v1434
        %v1436 = vsel %vm1433, %v1435, %v1431
        %v1437 = vmul.f32 1.0, %v1436
        %v1438 = vxor.u32 %v1377, 2147483648
        %v1439 = vmul.f32 %v1438, 1.442695
        %v1440 = vpow.pop %v1439
        %v1441 = vadd.f32 %v1440, 1.0
        %v1442 = vrcp.pop %v1441
        %v1443 = vmul.f32 %v1441, %v1442
        %v1444 = vsub.f32 1.0, %v1443
        %v1445 = vmul.f32 %v1442, %v1444
        %v1446 = vadd.f32 %v1442, %v1445
        %vm1447 = vweird.f32 %v1441
        %vm1448 = vweird.f32 %v1442
        %vm1449 = vmor %vm1447, %vm1448
        %v1450 = vsel %vm1449, %v1442, %v1446
        %v1451 = vand.u32 2147483647, %v1441
        %vm1452 = vcmp.eq.f32.partialorder %v1451, 8.507059e+37
        %v1453 = vand.u32 %v1441, 2147483648
        %v1454 = vor.u32 1.1754944e-38, %v1453
        %v1455 = vsel %vm1452, %v1454, %v1450
        %v1456 = vmul.f32 1.0, %v1455
        %v1457 = vtanh.pop %v1397
        %v1458 = vxor.u32 %v1417, 2147483648
        %v1459 = vmul.f32 %v1458, 1.442695
        %v1460 = vpow.pop %v1459
        %v1461 = vadd.f32 %v1460, 1.0
        %v1462 = vrcp.pop %v1461
        %v1463 = vmul.f32 %v1461, %v1462
        %v1464 = vsub.f32 1.0, %v1463
        %v1465 = vmul.f32 %v1462, %v1464
        %v1466 = vadd.f32 %v1462, %v1465
        %vm1467 = vweird.f32 %v1461
        %vm1468 = vweird.f32 %v1462
        %vm1469 = vmor %vm1467, %vm1468
        %v1470 = vsel %vm1469, %v1462, %v1466
        %v1471 = vand.u32 2147483647, %v1461
        %vm1472 = vcmp.eq.f32.partialorder %v1471, 8.507059e+37
        %v1473 = vand.u32 %v1461, 2147483648
        %v1474 = vor.u32 1.1754944e-38, %v1473
        %v1475 = vsel %vm1472, %v1474, %v1470
        %v1476 = vmul.f32 1.0, %v1475
        %v1477 = vmul.f32 %v1456, %v1236
        %v1478 = vmul.f32 %v1437, %v1457
        %v1479 = vadd.f32 %v1477, %v1478
        %v1480 = vtanh.pop %v1479
        %v1481 = vmul.f32 %v1476, %v1480
        %1482 = vst [vmem:[#allocation2] sm:$0x3] %v1481
        %1483 = vst [vmem:[#allocation3] sm:$0x3] %v1479
        %p1484 = scmp.eq.s32.totalorder %s30, 1
        // Predicated region
        $region65: #{tpu_custom_call.1} parent=51 // pred_check
          %p1485 = pneg %p1484
        $region66: #{tpu_custom_call.1} parent=51 // pred_check_branch
          %1487 = sbr.rel (%p1485) target = $region68
        $region67: #{tpu_custom_call.1} parent=51 // pred_region
          %1488 = vst [vmem:[#allocation10] sm:$0x3] %v1481
          %v1489 = vld [vmem:[#allocation7] sm:$0xff]
          %v1490 = vld [vmem:[#allocation7 + $0x8] sm:$0xff]
          %v1491 = vld [vmem:[#allocation7 + $0x10] sm:$0xff]
          %v1492 = vld [vmem:[#allocation7 + $0x18] sm:$0xff]
          %v1493 = vld [vmem:[#allocation7 + $0x20] sm:$0xff]
          %v1494 = vld [vmem:[#allocation7 + $0x28] sm:$0xff]
          %v1495 = vld [vmem:[#allocation7 + $0x30] sm:$0xff]
          %v1496 = vld [vmem:[#allocation7 + $0x38] sm:$0xff]
          %v1497 = vld [vmem:[#allocation7 + $0x40] sm:$0xff]
          %v1498 = vld [vmem:[#allocation7 + $0x48] sm:$0xff]
          %v1499 = vld [vmem:[#allocation7 + $0x50] sm:$0xff]
          %v1500 = vld [vmem:[#allocation7 + $0x58] sm:$0xff]
          %v1501 = vld [vmem:[#allocation7 + $0x60] sm:$0xff]
          %v1502 = vld [vmem:[#allocation7 + $0x68] sm:$0xff]
          %v1503 = vld [vmem:[#allocation7 + $0x70] sm:$0xff]
          %v1504 = vld [vmem:[#allocation7 + $0x78] sm:$0xff]
          %v1505 = vld [vmem:[%s7] sm:$0x1]
          %v1507 = vperm.slane %v1505, 0
          %1509 = vmatpush.msra.mxu0 %v1504
          %1510 = vmatpush.msra.mxu0 %v1503
          %1511 = vmatpush.msra.mxu0 %v1502
          %1512 = vmatpush.msra.mxu0 %v1501
          %1513 = vmatpush.msra.mxu0 %v1500
          %1514 = vmatpush.msra.mxu0 %v1499
          %1515 = vmatpush.msra.mxu0 %v1498
          %1516 = vmatpush.msra.mxu0 %v1497
          %1517 = vmatpush.msra.mxu0 %v1496
          %1518 = vmatpush.msra.mxu0 %v1495
          %1519 = vmatpush.msra.mxu0 %v1494
          %1520 = vmatpush.msra.mxu0 %v1493
          %1521 = vmatpush.msra.mxu0 %v1492
          %1522 = vmatpush.msra.mxu0 %v1491
          %1523 = vmatpush.msra.mxu0 %v1490
          %1524 = vmatpush.msra.mxu0 %v1489
          %1525 = vmatmul.f32.gmra.mxu0 %v1481
          %v1526 = vpop.f32.mrf.mxu0
          %v1527 = vadd.f32 %v1507, %v1526
          %1528 = vdwg.mxu0
          %1529 = vst [vmem:[#allocation9] sm:$0x3] %v1527
        $region68: #{tpu_custom_call.1} parent=51 // pred_fallthru
          _
        // Predicated region
        $region69: #{tpu_custom_call.1} parent=51 // pred_check
          %p1530 = pneg %p240
        $region70: #{tpu_custom_call.1} parent=51 // pred_check_branch
          %1532 = sbr.rel (%p1530) target = $region72
        $region71: #{tpu_custom_call.1} parent=51 // pred_region
          %1534 = vsyncadd [#allocation6], 0
          %s1535 = smul.addr %s29, 2
          %s1536 = scalar_lea.hbm %s8, %s1535
          %s1538 = sshll.u32 [#allocation9], 4
          %s1539 = int_to_ptr.vmem [resolvable:$true] %s1538
          %s1540 = sshll.u32 %s1536, 4
          %s1541 = int_to_ptr.hbm [resolvable:$true] %s1540
          %1543 = dma.vmem_to_hbm [thread:$0]  %s1539, 32, %s1541, [#allocation6]
        $region72: #{tpu_custom_call.1} parent=51 // pred_fallthru
          _
        // Predicated region
        $region73: #{tpu_custom_call.1} parent=51 // pred_check
          %p1544 = pneg %p266
        $region74: #{tpu_custom_call.1} parent=51 // pred_check_branch
          %1546 = sbr.rel (%p1544) target = $region76
        $region75: #{tpu_custom_call.1} parent=51 // pred_region
          %1548 = vsyncadd [#allocation11], 0
          %s1549 = smul.addr %s29, 2
          %s1550 = scalar_lea.hbm %s9, %s1549
          %s1552 = sshll.u32 [#allocation10], 4
          %s1553 = int_to_ptr.vmem [resolvable:$true] %s1552
          %s1554 = sshll.u32 %s1550, 4
          %s1555 = int_to_ptr.hbm [resolvable:$true] %s1554
          %1557 = dma.vmem_to_hbm [thread:$0]  %s1553, 32, %s1555, [#allocation11]
        $region76: #{tpu_custom_call.1} parent=51 // pred_fallthru
          _
        // Predicated region
        $region77: #{tpu_custom_call.1} parent=51 // pred_check
          %p1558 = pneg %p240
        $region78: #{tpu_custom_call.1} parent=51 // pred_check_branch
          %1560 = sbr.rel (%p1558) target = $region80
        $region79: #{tpu_custom_call.1} parent=51 // pred_region
          %1562 = dma.done [#allocation6], 32
        $region80: #{tpu_custom_call.1} parent=51 // pred_fallthru
          _
        // Predicated region
        $region81: #{tpu_custom_call.1} parent=51 // pred_check
          %p1563 = pneg %p266
        $region82: #{tpu_custom_call.1} parent=51 // pred_check_branch
          %1565 = sbr.rel (%p1563) target = $region84
        $region83: #{tpu_custom_call.1} parent=51 // pred_region
          %1567 = dma.done [#allocation11], 32
        $region84: #{tpu_custom_call.1} parent=51 // pred_fallthru
          _
      $region52: #{tpu_custom_call.1} parent=5 // pred_fallthru
        _
      %p1568 = scmp.le.s32.totalorder 2, %s20
      // Predicated region
      $region85: #{tpu_custom_call.1} parent=5 // pred_check
        %p1569 = pneg %p1568
      $region86: #{tpu_custom_call.1} parent=5 // pred_check_branch
        %1571 = sbr.rel (%p1569) target = $region88
      $region87: #{tpu_custom_call.1} parent=5 // pred_region
        %s1572 = ssub.s32 %s20, 2
      $region88: #{tpu_custom_call.1} parent=5 // pred_fallthru
        _
    $region6: #{tpu_custom_call.1} parent=1 // loop_footer
      %s24 = sadd.s32 1, %s20
    $region7: #{tpu_custom_call.1} parent=1 // loop_footer_branch
      %19 = sbr.rel target = $region3
    $region8: #{tpu_custom_call.1} parent=1 // loop_exit
      _
    %1573 = vsyncpa [#allocation5], 1
    %s1574 = scalar_lea.sflag [#allocation5], 1
    %1575 = vsyncpa %s1574, 1
    %1576 = vsyncpa [#allocation8], 1
    %1577 = vsyncpa [#allocation6], 1
    %s1578 = scalar_lea.sflag [#allocation6], 1
    %1579 = vsyncpa %s1578, 1
    %1580 = vsyncpa [#allocation11], 1

</llo_original>
